<compile_context>
chip_gen: v6e
topology: v6e:2x2x1
jax: 0.10.0
libtpu: 0.0.40
codegen_flags: <defaults>
</compile_context>

<pallas_src>
import functools

import jax
import jax.numpy as jnp
from jax.experimental import pallas as pl
from jax.experimental.pallas import tpu as pltpu


def _round_up(n, m):
    return (n + m - 1) // m * m


# --------------------------------------------------------------------------
# Fused kernel: conv3x3+BN+ReLU -> conv3x3+BN+ReLU -> conv1x1+bias
# Layout inside the kernel: channels-first, spatially flattened over the
# zero-padded (Hp x Wp) grid; flat index p = y*Wp + x lives on the lane axis.
# --------------------------------------------------------------------------
def _fused_segmodel_kernel(x_ref, w1_ref, b1_ref, w2_ref, b2_ref, wc_ref,
                           bc_ref, mask_ref, o_ref, im1_ref, y1_ref, im2_ref,
                           *, W, nlane, margin):
    # x_ref   : (1, Cin, LTOT)   bf16  padded-flat image at [margin, margin+NP)
    # w1_ref  : (C1, 9*Cin)      bf16  tap-stacked weights, BN scale folded in
    # b1_ref  : (C1, 1)          f32   folded BN bias
    # w2_ref  : (C2, 9*C1)       bf16
    # b2_ref  : (C2, 1)          f32
    # wc_ref  : (CLS, C2)        bf16  1x1 classifier weights
    # bc_ref  : (CLS, 1)         f32
    # mask_ref: (1, nlane)       f32   1.0 at interior positions, 0.0 on halo
    # o_ref   : (1, CLS, nlane)  f32
    # im1_ref : (9*Cin, nlane)   bf16  im2col scratch, stage 1
    # y1_ref  : (C1, LTOT)       bf16  VMEM-resident intermediate activation
    # im2_ref : (9*C1, nlane)    bf16  im2col scratch, stage 2
    wp = W + 2
    shifts = [dy * wp + dx for dy in (-1, 0, 1) for dx in (-1, 0, 1)]
    ltot = y1_ref.shape[1]
    cin = x_ref.shape[1]
    c1 = y1_ref.shape[0]

    # ---- stage 1: backbone conv3x3 (+ folded BN) + ReLU -------------------
    # im2col staging: one store per tap, then a single MXU dot (K = 9*Cin).
    # Tap block offsets t*cin are even, so bf16 sublane packing stays whole.
    for t, s in enumerate(shifts):
        im1_ref[t * cin:(t + 1) * cin, :] = (
            x_ref[0, :, margin + s: margin + s + nlane])
    acc1 = jnp.dot(w1_ref[...], im1_ref[...],
                   preferred_element_type=jnp.float32)
    # Mask IS required on y1: stage-2 taps must see conv "padding" zeros at
    # halo/tail positions, not conv-evaluated values.
    y1 = jnp.maximum(acc1 + b1_ref[...], 0.0) * mask_ref[...]

    # Stage the intermediate in VMEM scratch (never touches HBM); zero the
    # lane-aligned margins so shifted reads below are well defined.  Not
    # gated on program_id(0)==0: megacore gives each core its own scratch
    # while program_id stays global, so the guard would skip the init on
    # every core except the one running step 0.
    y1_ref[:, 0:margin] = jnp.zeros((c1, margin), y1_ref.dtype)
    y1_ref[:, margin + nlane:ltot] = jnp.zeros(
        (c1, ltot - margin - nlane), y1_ref.dtype)
    y1_ref[:, margin:margin + nlane] = y1.astype(y1_ref.dtype)

    # ---- stage 2: flayer conv3x3 (+ folded BN) + ReLU ---------------------
    for t, s in enumerate(shifts):
        im2_ref[t * c1:(t + 1) * c1, :] = (
            y1_ref[:, margin + s: margin + s + nlane])
    acc2 = jnp.dot(w2_ref[...], im2_ref[...],
                   preferred_element_type=jnp.float32)
    # No halo mask on y2: halo/tail lanes only feed the pointwise classifier,
    # whose halo outputs are sliced away in the wrapper.
    y2 = jnp.maximum(acc2 + b2_ref[...], 0.0)

    # ---- dropout: identity at inference -----------------------------------
    # TODO(synk): training-mode Dropout2d (per-channel Bernoulli mask) not
    #             implemented.

    # ---- stage 3: 1x1 classify conv + bias --------------------------------
    y3 = jnp.dot(wc_ref[...], y2.astype(jnp.bfloat16),
                 preferred_element_type=jnp.float32) + bc_ref[...]
    o_ref[0] = y3                                           # lane-dense store


# --------------------------------------------------------------------------
# Parameter construction, BN folding and the full forward wrapper
# --------------------------------------------------------------------------
def _fold_bn(gamma, beta, mean, var, eps=1e-5):
    scale = gamma / jnp.sqrt(var + eps)
    bias = beta - mean * scale
    return scale, bias


def make_params(key, cin, c_bb, fchannel, classes):
    ks = jax.random.split(key, 10)
    p = {}
    p["w_bb"] = 0.1 * jax.random.normal(ks[0], (3, 3, cin, c_bb), jnp.float32)
    p["bn_bb"] = (
        1.0 + 0.1 * jax.random.normal(ks[1], (c_bb,), jnp.float32),           # gamma
        0.1 * jax.random.normal(ks[2], (c_bb,), jnp.float32),                 # beta
        0.1 * jax.random.normal(ks[3], (c_bb,), jnp.float32),                 # mean
        1.0 + 0.1 * jnp.abs(jax.random.normal(ks[4], (c_bb,), jnp.float32)),  # var
    )
    p["w_f"] = 0.1 * jax.random.normal(ks[5], (3, 3, c_bb, fchannel), jnp.float32)
    p["bn_f"] = (
        1.0 + 0.1 * jax.random.normal(ks[6], (fchannel,), jnp.float32),
        0.1 * jax.random.normal(ks[7], (fchannel,), jnp.float32),
        0.1 * jax.random.normal(ks[8], (fchannel,), jnp.float32),
        1.0 + 0.1 * jnp.abs(jax.random.normal(ks[9], (fchannel,), jnp.float32)),
    )
    kc1, kc2 = jax.random.split(ks[0])
    p["w_cls"] = 0.1 * jax.random.normal(kc1, (fchannel, classes), jnp.float32)
    p["b_cls"] = 0.1 * jax.random.normal(kc2, (classes,), jnp.float32)
    return p


@jax.jit
def segmodel_forward(x_nchw, params):
    B, Cin, H, W = x_nchw.shape
    Hp, Wp = H + 2, W + 2
    NP = Hp * Wp
    NLANE = _round_up(NP, 128)
    # Lane-aligned halo margin; must cover the largest tap shift |Wp + 1|.
    MARGIN = _round_up(Wp + 1, 128)
    LTOT = MARGIN + NLANE + MARGIN

    # --- fold BN scale into the conv weights (wrapper-side, one-off) -------
    s1, b1 = _fold_bn(*params["bn_bb"])
    s2, b2 = _fold_bn(*params["bn_f"])
    w1_hwio = (params["w_bb"] * s1).astype(jnp.bfloat16)     # (3,3,Cin,C1)
    w2_hwio = (params["w_f"] * s2).astype(jnp.bfloat16)      # (3,3,C1,C2)
    C1 = w1_hwio.shape[-1]
    C2 = w2_hwio.shape[-1]
    # Tap-stacked weight matrices (Cout, 9*Cin), column index = t*Cin + c,
    # matching the im2col row order inside the kernel (one dot per stage).
    w1_stack = jnp.transpose(
        w1_hwio.reshape(9, Cin, C1), (2, 0, 1)).reshape(C1, 9 * Cin)
    w2_stack = jnp.transpose(
        w2_hwio.reshape(9, C1, C2), (2, 0, 1)).reshape(C2, 9 * C1)
    wc = jnp.transpose(params["w_cls"], (1, 0)).astype(jnp.bfloat16)  # (CLS,C2)
    CLS = wc.shape[0]
    b1 = b1.reshape(C1, 1).astype(jnp.float32)
    b2 = b2.reshape(C2, 1).astype(jnp.float32)
    bc = params["b_cls"].reshape(CLS, 1).astype(jnp.float32)

    # --- input: NCHW -> zero-padded, flattened, margin-extended, bf16 ------
    # TODO(synk): for large inputs build this layout inside the kernel from
    #             the raw NCHW tensor (memory_space=pl.ANY) to avoid the
    #             extra padded-input HBM round trip.
    xp = jnp.pad(x_nchw.astype(jnp.float32), ((0, 0), (0, 0), (1, 1), (1, 1)))
    xf = xp.reshape(B, Cin, NP)
    x_ext = jnp.pad(
        xf, ((0, 0), (0, 0), (MARGIN, LTOT - MARGIN - NP))
    ).astype(jnp.bfloat16)                                    # (B, Cin, LTOT)

    # interior mask over the flat padded index (zeros at halo + lane tail)
    p = jnp.arange(NLANE, dtype=jnp.int32)
    yy, xx = p // Wp, p % Wp
    mask = ((yy >= 1) & (yy <= H) & (xx >= 1) & (xx <= W))
    mask = mask.astype(jnp.float32).reshape(1, NLANE)

    kernel = functools.partial(
        _fused_segmodel_kernel, W=W, nlane=NLANE, margin=MARGIN)

    out_flat = pl.pallas_call(
        kernel,
        out_shape=jax.ShapeDtypeStruct((B, CLS, NLANE), jnp.float32),
        grid_spec=pltpu.PrefetchScalarGridSpec(
            num_scalar_prefetch=0,
            grid=(B,),
            in_specs=[
                pl.BlockSpec((1, Cin, LTOT), lambda b: (b, 0, 0)),
                pl.BlockSpec((C1, 9 * Cin), lambda b: (0, 0)),
                pl.BlockSpec((C1, 1), lambda b: (0, 0)),
                pl.BlockSpec((C2, 9 * C1), lambda b: (0, 0)),
                pl.BlockSpec((C2, 1), lambda b: (0, 0)),
                pl.BlockSpec((CLS, C2), lambda b: (0, 0)),
                pl.BlockSpec((CLS, 1), lambda b: (0, 0)),
                pl.BlockSpec((1, NLANE), lambda b: (0, 0)),
            ],
            out_specs=pl.BlockSpec((1, CLS, NLANE), lambda b: (b, 0, 0)),
            scratch_shapes=[
                pltpu.VMEM((9 * Cin, NLANE), jnp.bfloat16),   # im2col stage 1
                pltpu.VMEM((C1, LTOT), jnp.bfloat16),         # y1 extended buf
                pltpu.VMEM((9 * C1, NLANE), jnp.bfloat16),    # im2col stage 2
            ],
        ),
        compiler_params=pltpu.CompilerParams(
            dimension_semantics=("parallel",),
        ),
    )(x_ext, w1_stack, b1, w2_stack, b2, wc, bc, mask)

    # lane-dense flat output -> NCHW (metadata-only reshape/slice)
    out = out_flat[:, :, :NP].reshape(B, CLS, Hp, Wp)[:, :, 1:Hp - 1, 1:Wp - 1]
    return out


def _reference_forward(x_nchw, params):
    """Plain-JAX reference mirroring the kernel's bf16 matmul inputs."""
    s1, b1 = _fold_bn(*params["bn_bb"])
    s2, b2 = _fold_bn(*params["bn_f"])
    w1 = (params["w_bb"] * s1).astype(jnp.bfloat16)
    w2 = (params["w_f"] * s2).astype(jnp.bfloat16)
    wc = params["w_cls"].astype(jnp.bfloat16)

    def conv(x_bf16, w):
        return jax.lax.conv_general_dilated(
            x_bf16, w, (1, 1), "SAME",
            dimension_numbers=("NHWC", "HWIO", "NHWC"),
            preferred_element_type=jnp.float32)

    x = jnp.transpose(x_nchw, (0, 2, 3, 1)).astype(jnp.bfloat16)
    y = jnp.maximum(conv(x, w1) + b1, 0.0).astype(jnp.bfloat16)
    y = jnp.maximum(conv(y, w2) + b2, 0.0).astype(jnp.bfloat16)
    y = jnp.einsum("bhwc,ck->bhwk", y, wc,
                   preferred_element_type=jnp.float32) + params["b_cls"]
    return jnp.transpose(y, (0, 3, 1, 2))


if __name__ == "__main__":
    B, Cin, H, W = 2, 4, 16, 16
    C_BB, FCHANNEL, CLASSES = 8, 8, 2

    key = jax.random.PRNGKey(0)
    kx, kp = jax.random.split(key)
    x = jax.random.normal(kx, (B, Cin, H, W), jnp.float32)   # NCHW like PyTorch
    params = make_params(kp, Cin, C_BB, FCHANNEL, CLASSES)

    out = segmodel_forward(x, params)
    out = jax.block_until_ready(out)

    ref = _reference_forward(x, params)
    assert out.shape == (B, CLASSES, H, W), out.shape
    err = float(jnp.max(jnp.abs(out - ref)))
    assert err < 2e-2, err   # bf16-matmul tolerance; structural bugs are ~0.1
    print("KERNEL_OK")
</pallas_src>

<mosaic_0001>
module attributes {stable_mosaic.version = 11 : i64} {
  func.func @_fused_segmodel_kernel(%arg0: i32, %arg1: memref<1x4x640xbf16, #tpu.memory_space<vmem>>, %arg2: memref<8x36xbf16, #tpu.memory_space<vmem>>, %arg3: memref<8x1xf32, #tpu.memory_space<vmem>>, %arg4: memref<8x72xbf16, #tpu.memory_space<vmem>>, %arg5: memref<8x1xf32, #tpu.memory_space<vmem>>, %arg6: memref<2x8xbf16, #tpu.memory_space<vmem>>, %arg7: memref<2x1xf32, #tpu.memory_space<vmem>>, %arg8: memref<1x384xf32, #tpu.memory_space<vmem>>, %arg9: memref<1x2x384xf32, #tpu.memory_space<vmem>>, %arg10: memref<36x384xbf16, #tpu.memory_space<vmem>>, %arg11: memref<8x640xbf16, #tpu.memory_space<vmem>>, %arg12: memref<72x384xbf16, #tpu.memory_space<vmem>>) attributes {dimension_semantics = [#tpu.dimension_semantics<parallel>], iteration_bounds = array<i64: 2>, scalar_prefetch = 0 : i64, scratch_operands = 3 : i64, tpu.core_type = #tpu.core_type<tc>, window_params = [{transform_indices = @transform_0, window_bounds = array<i64: 1, 4, 640>}, {pipeline_mode = #tpu.pipeline_mode<synchronous>, transform_indices = @transform_1, window_bounds = array<i64: 8, 36>}, {pipeline_mode = #tpu.pipeline_mode<synchronous>, transform_indices = @transform_2, window_bounds = array<i64: 8, 1>}, {pipeline_mode = #tpu.pipeline_mode<synchronous>, transform_indices = @transform_3, window_bounds = array<i64: 8, 72>}, {pipeline_mode = #tpu.pipeline_mode<synchronous>, transform_indices = @transform_4, window_bounds = array<i64: 8, 1>}, {pipeline_mode = #tpu.pipeline_mode<synchronous>, transform_indices = @transform_5, window_bounds = array<i64: 2, 8>}, {pipeline_mode = #tpu.pipeline_mode<synchronous>, transform_indices = @transform_6, window_bounds = array<i64: 2, 1>}, {pipeline_mode = #tpu.pipeline_mode<synchronous>, transform_indices = @transform_7, window_bounds = array<i64: 1, 384>}, {transform_indices = @transform_8, window_bounds = array<i64: 1, 2, 384>}]} {
    %c0 = arith.constant 0 : index
    %c0_0 = arith.constant 0 : index
    %c109 = arith.constant 109 : index
    %0 = vector.load %arg1[%c0, %c0_0, %c109] : memref<1x4x640xbf16, #tpu.memory_space<vmem>>, vector<1x4x384xbf16>
    %1 = vector.shape_cast %0 : vector<1x4x384xbf16> to vector<4x384xbf16>
    %c0_1 = arith.constant 0 : index
    %c0_2 = arith.constant 0 : index
    %2 = vector.load %arg10[%c0_1, %c0_2] : memref<36x384xbf16, #tpu.memory_space<vmem>>, vector<4x384xbf16>
    tpu.vector_store %arg10[%c0_1, %c0_2], %1 {strides = array<i32>} : memref<36x384xbf16, #tpu.memory_space<vmem>>, vector<4x384xbf16>,
    %c0_3 = arith.constant 0 : index
    %c0_4 = arith.constant 0 : index
    %c110 = arith.constant 110 : index
    %3 = vector.load %arg1[%c0_3, %c0_4, %c110] : memref<1x4x640xbf16, #tpu.memory_space<vmem>>, vector<1x4x384xbf16>
    %4 = vector.shape_cast %3 : vector<1x4x384xbf16> to vector<4x384xbf16>
    %c4 = arith.constant 4 : index
    %c0_5 = arith.constant 0 : index
    %5 = vector.load %arg10[%c4, %c0_5] : memref<36x384xbf16, #tpu.memory_space<vmem>>, vector<4x384xbf16>
    tpu.vector_store %arg10[%c4, %c0_5], %4 {strides = array<i32>} : memref<36x384xbf16, #tpu.memory_space<vmem>>, vector<4x384xbf16>,
    %c0_6 = arith.constant 0 : index
    %c0_7 = arith.constant 0 : index
    %c111 = arith.constant 111 : index
    %6 = vector.load %arg1[%c0_6, %c0_7, %c111] : memref<1x4x640xbf16, #tpu.memory_space<vmem>>, vector<1x4x384xbf16>
    %7 = vector.shape_cast %6 : vector<1x4x384xbf16> to vector<4x384xbf16>
    %c8 = arith.constant 8 : index
    %c0_8 = arith.constant 0 : index
    %8 = vector.load %arg10[%c8, %c0_8] : memref<36x384xbf16, #tpu.memory_space<vmem>>, vector<4x384xbf16>
    tpu.vector_store %arg10[%c8, %c0_8], %7 {strides = array<i32>} : memref<36x384xbf16, #tpu.memory_space<vmem>>, vector<4x384xbf16>,
    %c0_9 = arith.constant 0 : index
    %c0_10 = arith.constant 0 : index
    %c127 = arith.constant 127 : index
    %9 = vector.load %arg1[%c0_9, %c0_10, %c127] : memref<1x4x640xbf16, #tpu.memory_space<vmem>>, vector<1x4x384xbf16>
    %10 = vector.shape_cast %9 : vector<1x4x384xbf16> to vector<4x384xbf16>
    %c12 = arith.constant 12 : index
    %c0_11 = arith.constant 0 : index
    %11 = vector.load %arg10[%c12, %c0_11] : memref<36x384xbf16, #tpu.memory_space<vmem>>, vector<4x384xbf16>
    tpu.vector_store %arg10[%c12, %c0_11], %10 {strides = array<i32>} : memref<36x384xbf16, #tpu.memory_space<vmem>>, vector<4x384xbf16>,
    %c0_12 = arith.constant 0 : index
    %c0_13 = arith.constant 0 : index
    %c128 = arith.constant 128 : index
    %12 = vector.load %arg1[%c0_12, %c0_13, %c128] : memref<1x4x640xbf16, #tpu.memory_space<vmem>>, vector<1x4x384xbf16>
    %13 = vector.shape_cast %12 : vector<1x4x384xbf16> to vector<4x384xbf16>
    %c16 = arith.constant 16 : index
    %c0_14 = arith.constant 0 : index
    %14 = vector.load %arg10[%c16, %c0_14] : memref<36x384xbf16, #tpu.memory_space<vmem>>, vector<4x384xbf16>
    tpu.vector_store %arg10[%c16, %c0_14], %13 {strides = array<i32>} : memref<36x384xbf16, #tpu.memory_space<vmem>>, vector<4x384xbf16>,
    %c0_15 = arith.constant 0 : index
    %c0_16 = arith.constant 0 : index
    %c129 = arith.constant 129 : index
    %15 = vector.load %arg1[%c0_15, %c0_16, %c129] : memref<1x4x640xbf16, #tpu.memory_space<vmem>>, vector<1x4x384xbf16>
    %16 = vector.shape_cast %15 : vector<1x4x384xbf16> to vector<4x384xbf16>
    %c20 = arith.constant 20 : index
    %c0_17 = arith.constant 0 : index
    %17 = vector.load %arg10[%c20, %c0_17] : memref<36x384xbf16, #tpu.memory_space<vmem>>, vector<4x384xbf16>
    tpu.vector_store %arg10[%c20, %c0_17], %16 {strides = array<i32>} : memref<36x384xbf16, #tpu.memory_space<vmem>>, vector<4x384xbf16>,
    %c0_18 = arith.constant 0 : index
    %c0_19 = arith.constant 0 : index
    %c145 = arith.constant 145 : index
    %18 = vector.load %arg1[%c0_18, %c0_19, %c145] : memref<1x4x640xbf16, #tpu.memory_space<vmem>>, vector<1x4x384xbf16>
    %19 = vector.shape_cast %18 : vector<1x4x384xbf16> to vector<4x384xbf16>
    %c24 = arith.constant 24 : index
    %c0_20 = arith.constant 0 : index
    %20 = vector.load %arg10[%c24, %c0_20] : memref<36x384xbf16, #tpu.memory_space<vmem>>, vector<4x384xbf16>
    tpu.vector_store %arg10[%c24, %c0_20], %19 {strides = array<i32>} : memref<36x384xbf16, #tpu.memory_space<vmem>>, vector<4x384xbf16>,
    %c0_21 = arith.constant 0 : index
    %c0_22 = arith.constant 0 : index
    %c146 = arith.constant 146 : index
    %21 = vector.load %arg1[%c0_21, %c0_22, %c146] : memref<1x4x640xbf16, #tpu.memory_space<vmem>>, vector<1x4x384xbf16>
    %22 = vector.shape_cast %21 : vector<1x4x384xbf16> to vector<4x384xbf16>
    %c28 = arith.constant 28 : index
    %c0_23 = arith.constant 0 : index
    %23 = vector.load %arg10[%c28, %c0_23] : memref<36x384xbf16, #tpu.memory_space<vmem>>, vector<4x384xbf16>
    tpu.vector_store %arg10[%c28, %c0_23], %22 {strides = array<i32>} : memref<36x384xbf16, #tpu.memory_space<vmem>>, vector<4x384xbf16>,
    %c0_24 = arith.constant 0 : index
    %c0_25 = arith.constant 0 : index
    %c147 = arith.constant 147 : index
    %24 = vector.load %arg1[%c0_24, %c0_25, %c147] : memref<1x4x640xbf16, #tpu.memory_space<vmem>>, vector<1x4x384xbf16>
    %25 = vector.shape_cast %24 : vector<1x4x384xbf16> to vector<4x384xbf16>
    %c32 = arith.constant 32 : index
    %c0_26 = arith.constant 0 : index
    %26 = vector.load %arg10[%c32, %c0_26] : memref<36x384xbf16, #tpu.memory_space<vmem>>, vector<4x384xbf16>
    tpu.vector_store %arg10[%c32, %c0_26], %25 {strides = array<i32>} : memref<36x384xbf16, #tpu.memory_space<vmem>>, vector<4x384xbf16>,
    %c0_27 = arith.constant 0 : index
    %c0_28 = arith.constant 0 : index
    %27 = vector.load %arg2[%c0_27, %c0_28] : memref<8x36xbf16, #tpu.memory_space<vmem>>, vector<8x36xbf16>
    %c0_29 = arith.constant 0 : index
    %c0_30 = arith.constant 0 : index
    %28 = vector.load %arg10[%c0_29, %c0_30] : memref<36x384xbf16, #tpu.memory_space<vmem>>, vector<36x384xbf16>
    %cst = arith.constant dense<0.000000e+00> : vector<8x384xf32>
    %29 = tpu.matmul %27, %28, %cst {dimension_numbers = #tpu.dot_dimension_numbers<[1], [0], [0], [1], [0, 0, 1, 1], [], []>} : vector<8x36xbf16>, vector<36x384xbf16>, vector<8x384xf32> -> vector<8x384xf32>
    %c0_31 = arith.constant 0 : index
    %c0_32 = arith.constant 0 : index
    %30 = vector.load %arg3[%c0_31, %c0_32] : memref<8x1xf32, #tpu.memory_space<vmem>>, vector<8x1xf32>
    %31 = vector.broadcast %30 : vector<8x1xf32> to vector<8x384xf32>
    %32 = arith.addf %29, %31 : vector<8x384xf32>
    %cst_33 = arith.constant 0.000000e+00 : f32
    %33 = vector.broadcast %cst_33 : f32 to vector<8x384xf32>
    %34 = arith.maximumf %32, %33 : vector<8x384xf32>
    %c0_34 = arith.constant 0 : index
    %c0_35 = arith.constant 0 : index
    %35 = vector.load %arg8[%c0_34, %c0_35] : memref<1x384xf32, #tpu.memory_space<vmem>>, vector<1x384xf32>
    %36 = vector.broadcast %35 : vector<1x384xf32> to vector<8x384xf32>
    %37 = arith.mulf %34, %36 : vector<8x384xf32>
    %cst_36 = arith.constant 0.000000e+00 : bf16
    %38 = vector.broadcast %cst_36 : bf16 to vector<8x128xbf16>
    %c0_37 = arith.constant 0 : index
    %c0_38 = arith.constant 0 : index
    %39 = vector.load %arg11[%c0_37, %c0_38] : memref<8x640xbf16, #tpu.memory_space<vmem>>, vector<8x128xbf16>
    tpu.vector_store %arg11[%c0_37, %c0_38], %38 {strides = array<i32>} : memref<8x640xbf16, #tpu.memory_space<vmem>>, vector<8x128xbf16>,
    %cst_39 = arith.constant 0.000000e+00 : bf16
    %40 = vector.broadcast %cst_39 : bf16 to vector<8x128xbf16>
    %c0_40 = arith.constant 0 : index
    %c512 = arith.constant 512 : index
    %41 = vector.load %arg11[%c0_40, %c512] : memref<8x640xbf16, #tpu.memory_space<vmem>>, vector<8x128xbf16>
    tpu.vector_store %arg11[%c0_40, %c512], %40 {strides = array<i32>} : memref<8x640xbf16, #tpu.memory_space<vmem>>, vector<8x128xbf16>,
    %42 = arith.truncf %37 : vector<8x384xf32> to vector<8x384xbf16>
    %c0_41 = arith.constant 0 : index
    %c128_42 = arith.constant 128 : index
    %43 = vector.load %arg11[%c0_41, %c128_42] : memref<8x640xbf16, #tpu.memory_space<vmem>>, vector<8x384xbf16>
    tpu.vector_store %arg11[%c0_41, %c128_42], %42 {strides = array<i32>} : memref<8x640xbf16, #tpu.memory_space<vmem>>, vector<8x384xbf16>,
    %c0_43 = arith.constant 0 : index
    %c109_44 = arith.constant 109 : index
    %44 = vector.load %arg11[%c0_43, %c109_44] : memref<8x640xbf16, #tpu.memory_space<vmem>>, vector<8x384xbf16>
    %c0_45 = arith.constant 0 : index
    %c0_46 = arith.constant 0 : index
    %45 = vector.load %arg12[%c0_45, %c0_46] : memref<72x384xbf16, #tpu.memory_space<vmem>>, vector<8x384xbf16>
    tpu.vector_store %arg12[%c0_45, %c0_46], %44 {strides = array<i32>} : memref<72x384xbf16, #tpu.memory_space<vmem>>, vector<8x384xbf16>,
    %c0_47 = arith.constant 0 : index
    %c110_48 = arith.constant 110 : index
    %46 = vector.load %arg11[%c0_47, %c110_48] : memref<8x640xbf16, #tpu.memory_space<vmem>>, vector<8x384xbf16>
    %c8_49 = arith.constant 8 : index
    %c0_50 = arith.constant 0 : index
    %47 = vector.load %arg12[%c8_49, %c0_50] : memref<72x384xbf16, #tpu.memory_space<vmem>>, vector<8x384xbf16>
    tpu.vector_store %arg12[%c8_49, %c0_50], %46 {strides = array<i32>} : memref<72x384xbf16, #tpu.memory_space<vmem>>, vector<8x384xbf16>,
    %c0_51 = arith.constant 0 : index
    %c111_52 = arith.constant 111 : index
    %48 = vector.load %arg11[%c0_51, %c111_52] : memref<8x640xbf16, #tpu.memory_space<vmem>>, vector<8x384xbf16>
    %c16_53 = arith.constant 16 : index
    %c0_54 = arith.constant 0 : index
    %49 = vector.load %arg12[%c16_53, %c0_54] : memref<72x384xbf16, #tpu.memory_space<vmem>>, vector<8x384xbf16>
    tpu.vector_store %arg12[%c16_53, %c0_54], %48 {strides = array<i32>} : memref<72x384xbf16, #tpu.memory_space<vmem>>, vector<8x384xbf16>,
    %c0_55 = arith.constant 0 : index
    %c127_56 = arith.constant 127 : index
    %50 = vector.load %arg11[%c0_55, %c127_56] : memref<8x640xbf16, #tpu.memory_space<vmem>>, vector<8x384xbf16>
    %c24_57 = arith.constant 24 : index
    %c0_58 = arith.constant 0 : index
    %51 = vector.load %arg12[%c24_57, %c0_58] : memref<72x384xbf16, #tpu.memory_space<vmem>>, vector<8x384xbf16>
    tpu.vector_store %arg12[%c24_57, %c0_58], %50 {strides = array<i32>} : memref<72x384xbf16, #tpu.memory_space<vmem>>, vector<8x384xbf16>,
    %c0_59 = arith.constant 0 : index
    %c128_60 = arith.constant 128 : index
    %52 = vector.load %arg11[%c0_59, %c128_60] : memref<8x640xbf16, #tpu.memory_space<vmem>>, vector<8x384xbf16>
    %c32_61 = arith.constant 32 : index
    %c0_62 = arith.constant 0 : index
    %53 = vector.load %arg12[%c32_61, %c0_62] : memref<72x384xbf16, #tpu.memory_space<vmem>>, vector<8x384xbf16>
    tpu.vector_store %arg12[%c32_61, %c0_62], %52 {strides = array<i32>} : memref<72x384xbf16, #tpu.memory_space<vmem>>, vector<8x384xbf16>,
    %c0_63 = arith.constant 0 : index
    %c129_64 = arith.constant 129 : index
    %54 = vector.load %arg11[%c0_63, %c129_64] : memref<8x640xbf16, #tpu.memory_space<vmem>>, vector<8x384xbf16>
    %c40 = arith.constant 40 : index
    %c0_65 = arith.constant 0 : index
    %55 = vector.load %arg12[%c40, %c0_65] : memref<72x384xbf16, #tpu.memory_space<vmem>>, vector<8x384xbf16>
    tpu.vector_store %arg12[%c40, %c0_65], %54 {strides = array<i32>} : memref<72x384xbf16, #tpu.memory_space<vmem>>, vector<8x384xbf16>,
    %c0_66 = arith.constant 0 : index
    %c145_67 = arith.constant 145 : index
    %56 = vector.load %arg11[%c0_66, %c145_67] : memref<8x640xbf16, #tpu.memory_space<vmem>>, vector<8x384xbf16>
    %c48 = arith.constant 48 : index
    %c0_68 = arith.constant 0 : index
    %57 = vector.load %arg12[%c48, %c0_68] : memref<72x384xbf16, #tpu.memory_space<vmem>>, vector<8x384xbf16>
    tpu.vector_store %arg12[%c48, %c0_68], %56 {strides = array<i32>} : memref<72x384xbf16, #tpu.memory_space<vmem>>, vector<8x384xbf16>,
    %c0_69 = arith.constant 0 : index
    %c146_70 = arith.constant 146 : index
    %58 = vector.load %arg11[%c0_69, %c146_70] : memref<8x640xbf16, #tpu.memory_space<vmem>>, vector<8x384xbf16>
    %c56 = arith.constant 56 : index
    %c0_71 = arith.constant 0 : index
    %59 = vector.load %arg12[%c56, %c0_71] : memref<72x384xbf16, #tpu.memory_space<vmem>>, vector<8x384xbf16>
    tpu.vector_store %arg12[%c56, %c0_71], %58 {strides = array<i32>} : memref<72x384xbf16, #tpu.memory_space<vmem>>, vector<8x384xbf16>,
    %c0_72 = arith.constant 0 : index
    %c147_73 = arith.constant 147 : index
    %60 = vector.load %arg11[%c0_72, %c147_73] : memref<8x640xbf16, #tpu.memory_space<vmem>>, vector<8x384xbf16>
    %c64 = arith.constant 64 : index
    %c0_74 = arith.constant 0 : index
    %61 = vector.load %arg12[%c64, %c0_74] : memref<72x384xbf16, #tpu.memory_space<vmem>>, vector<8x384xbf16>
    tpu.vector_store %arg12[%c64, %c0_74], %60 {strides = array<i32>} : memref<72x384xbf16, #tpu.memory_space<vmem>>, vector<8x384xbf16>,
    %c0_75 = arith.constant 0 : index
    %c0_76 = arith.constant 0 : index
    %62 = vector.load %arg4[%c0_75, %c0_76] : memref<8x72xbf16, #tpu.memory_space<vmem>>, vector<8x72xbf16>
    %c0_77 = arith.constant 0 : index
    %c0_78 = arith.constant 0 : index
    %63 = vector.load %arg12[%c0_77, %c0_78] : memref<72x384xbf16, #tpu.memory_space<vmem>>, vector<72x384xbf16>
    %cst_79 = arith.constant dense<0.000000e+00> : vector<8x384xf32>
    %64 = tpu.matmul %62, %63, %cst_79 {dimension_numbers = #tpu.dot_dimension_numbers<[1], [0], [0], [1], [0, 0, 1, 1], [], []>} : vector<8x72xbf16>, vector<72x384xbf16>, vector<8x384xf32> -> vector<8x384xf32>
    %c0_80 = arith.constant 0 : index
    %c0_81 = arith.constant 0 : index
    %65 = vector.load %arg5[%c0_80, %c0_81] : memref<8x1xf32, #tpu.memory_space<vmem>>, vector<8x1xf32>
    %66 = vector.broadcast %65 : vector<8x1xf32> to vector<8x384xf32>
    %67 = arith.addf %64, %66 : vector<8x384xf32>
    %cst_82 = arith.constant 0.000000e+00 : f32
    %68 = vector.broadcast %cst_82 : f32 to vector<8x384xf32>
    %69 = arith.maximumf %67, %68 : vector<8x384xf32>
    %c0_83 = arith.constant 0 : index
    %c0_84 = arith.constant 0 : index
    %70 = vector.load %arg6[%c0_83, %c0_84] : memref<2x8xbf16, #tpu.memory_space<vmem>>, vector<2x8xbf16>
    %71 = arith.truncf %69 : vector<8x384xf32> to vector<8x384xbf16>
    %cst_85 = arith.constant dense<0.000000e+00> : vector<2x384xf32>
    %72 = tpu.matmul %70, %71, %cst_85 {dimension_numbers = #tpu.dot_dimension_numbers<[1], [0], [0], [1], [0, 0, 1, 1], [], []>} : vector<2x8xbf16>, vector<8x384xbf16>, vector<2x384xf32> -> vector<2x384xf32>
    %c0_86 = arith.constant 0 : index
    %c0_87 = arith.constant 0 : index
    %73 = vector.load %arg7[%c0_86, %c0_87] : memref<2x1xf32, #tpu.memory_space<vmem>>, vector<2x1xf32>
    %74 = vector.broadcast %73 : vector<2x1xf32> to vector<2x384xf32>
    %75 = arith.addf %72, %74 : vector<2x384xf32>
    %c0_88 = arith.constant 0 : index
    %c0_89 = arith.constant 0 : index
    %c0_90 = arith.constant 0 : index
    %76 = vector.load %arg9[%c0_88, %c0_89, %c0_90] : memref<1x2x384xf32, #tpu.memory_space<vmem>>, vector<1x2x384xf32>
    %77 = vector.shape_cast %76 : vector<1x2x384xf32> to vector<2x384xf32>
    %78 = vector.shape_cast %75 : vector<2x384xf32> to vector<1x2x384xf32>
    tpu.vector_store %arg9[%c0_88, %c0_89, %c0_90], %78 {strides = array<i32>} : memref<1x2x384xf32, #tpu.memory_space<vmem>>, vector<1x2x384xf32>,
    return
  }
  func.func @transform_0(%arg0: i32) -> (i32, i32, i32) {
    %c0_i32 = arith.constant 0 : i32
    %c0_i32_0 = arith.constant 0 : i32
    %c0_i32_1 = arith.constant 0 : i32
    return %arg0, %c0_i32, %c0_i32_0 : i32, i32, i32
  }
  func.func @transform_1(%arg0: i32) -> (i32, i32) {
    %c0_i32 = arith.constant 0 : i32
    %c0_i32_0 = arith.constant 0 : i32
    %c0_i32_1 = arith.constant 0 : i32
    return %c0_i32, %c0_i32_0 : i32, i32
  }
  func.func @transform_2(%arg0: i32) -> (i32, i32) {
    %c0_i32 = arith.constant 0 : i32
    %c0_i32_0 = arith.constant 0 : i32
    %c0_i32_1 = arith.constant 0 : i32
    return %c0_i32, %c0_i32_0 : i32, i32
  }
  func.func @transform_3(%arg0: i32) -> (i32, i32) {
    %c0_i32 = arith.constant 0 : i32
    %c0_i32_0 = arith.constant 0 : i32
    %c0_i32_1 = arith.constant 0 : i32
    return %c0_i32, %c0_i32_0 : i32, i32
  }
  func.func @transform_4(%arg0: i32) -> (i32, i32) {
    %c0_i32 = arith.constant 0 : i32
    %c0_i32_0 = arith.constant 0 : i32
    %c0_i32_1 = arith.constant 0 : i32
    return %c0_i32, %c0_i32_0 : i32, i32
  }
  func.func @transform_5(%arg0: i32) -> (i32, i32) {
    %c0_i32 = arith.constant 0 : i32
    %c0_i32_0 = arith.constant 0 : i32
    %c0_i32_1 = arith.constant 0 : i32
    return %c0_i32, %c0_i32_0 : i32, i32
  }
  func.func @transform_6(%arg0: i32) -> (i32, i32) {
    %c0_i32 = arith.constant 0 : i32
    %c0_i32_0 = arith.constant 0 : i32
    %c0_i32_1 = arith.constant 0 : i32
    return %c0_i32, %c0_i32_0 : i32, i32
  }
  func.func @transform_7(%arg0: i32) -> (i32, i32) {
    %c0_i32 = arith.constant 0 : i32
    %c0_i32_0 = arith.constant 0 : i32
    %c0_i32_1 = arith.constant 0 : i32
    return %c0_i32, %c0_i32_0 : i32, i32
  }
  func.func @transform_8(%arg0: i32) -> (i32, i32, i32) {
    %c0_i32 = arith.constant 0 : i32
    %c0_i32_0 = arith.constant 0 : i32
    %c0_i32_1 = arith.constant 0 : i32
    return %arg0, %c0_i32, %c0_i32_0 : i32, i32, i32
  }
}

</mosaic_0001>

<llo_original>
// kernel: segmodel_forward.1
$region0: #{segmodel_forward.1}
  #allocation0 [shape = 'u32[]', space=smem, size = 0x4, offset = 0x4, fixed_abs, tag = 'smem constant byte address 0x4 - core index']
  #allocation1 [shape = 'u32[144,128]{1,0:T(1,128)}', space=vmem, size = 0x12000, scoped, tag = 'internal scratch']
  #allocation2 [shape = 'bf16[36,384]{1,0:T(8,128)(2,1)}', space=vmem, size = 0x7800, scoped, tag = 'scratch operand']
  #allocation3 [shape = 'bf16[8,640]{1,0:T(8,128)(2,1)}', space=vmem, size = 0x2800, scoped, tag = 'scratch operand']
  #allocation4 [shape = 'bf16[72,384]{1,0:T(8,128)(2,1)}', space=vmem, size = 0xd800, scoped, tag = 'scratch operand']
  %s0 = inlined_call_operand.vmem [shape: bf16[2,4,640], index: 0, kind: input, shape index: {}]
  %s1 = inlined_call_operand.vmem [shape: bf16[8,36], index: 1, kind: input, shape index: {}]
  %s2 = inlined_call_operand.vmem [shape: f32[8,1], index: 2, kind: input, shape index: {}]
  %s3 = inlined_call_operand.vmem [shape: bf16[8,72], index: 3, kind: input, shape index: {}]
  %s4 = inlined_call_operand.vmem [shape: f32[8,1], index: 4, kind: input, shape index: {}]
  %s5 = inlined_call_operand.vmem [shape: bf16[2,8], index: 5, kind: input, shape index: {}]
  %s6 = inlined_call_operand.vmem [shape: f32[2,1], index: 6, kind: input, shape index: {}]
  %s7 = inlined_call_operand.vmem [shape: f32[1,384], index: 7, kind: input, shape index: {}]
  %s8 = inlined_call_operand.vmem [shape: f32[2,2,384], index: 8, kind: output, shape index: {}]
  %s9 = sld [smem:[#allocation0]]
  $region65: #{segmodel_forward.1} parent=0
    _
  %s11 = ssub.s32 1, %s9
  %s12 = scalar_select 0, %s11, %s9
  loop: start=0, step=1, limit=4
  $region2: #{segmodel_forward.1} parent=0 // loop_pre_header
    _
  $region3: #{segmodel_forward.1} parent=0 // loop_header
    %s14 = sphi 0, %s18
    %p15 = scmp.ge.s32.totalorder %s14, 4
    %s24 = sphi 0, %s26
    %s27 = sphi 0, %s24
    %s28 = sphi 0, %s27
    %s44 = sphi 0, %s28
    %s48 = sphi 0, %s48
    %s50 = sphi 0, %s48
    %s51 = sphi 0, %s50
    %s65 = sphi 0, %s51
    %s69 = sphi 0, %s69
    %s71 = sphi 0, %s69
    %s72 = sphi 0, %s71
    %s86 = sphi 0, %s72
    %s90 = sphi 0, %s90
    %s92 = sphi 0, %s90
    %s93 = sphi 0, %s92
    %s107 = sphi 0, %s93
    %s111 = sphi 0, %s111
    %s113 = sphi 0, %s111
    %s114 = sphi 0, %s113
    %s128 = sphi 0, %s114
    %s132 = sphi 0, %s132
    %s134 = sphi 0, %s132
    %s135 = sphi 0, %s134
    %s149 = sphi 0, %s135
    %s153 = sphi 0, %s153
    %s155 = sphi 0, %s153
    %s156 = sphi 0, %s155
    %s170 = sphi 0, %s156
    %s174 = sphi 0, %s174
    %s176 = sphi 0, %s174
    %s177 = sphi 0, %s176
    %s191 = sphi 0, %s177
    %s197 = sphi 0, %s199
    %s200 = sphi 0, %s197
    %s201 = sphi 0, %s200
    %s217 = sphi 0, %s201
  $region4: #{segmodel_forward.1} parent=0 // loop_header_branch
    %17 = sbr.rel (%p15) target = $region8
  $region5: #{segmodel_forward.1} parent=0 // loop_body
    %s19 = ssub.s32 %s14, 1
    %s20 = ssub.s32 %s14, 2
    %s21 = sadd.s32 %s14, 1
    %s22 = ssub.s32 %s14, %s21
    %p23 = scmp.eq.s32.totalorder %s22, 0
    %s25 = sadd.s32 %s24, 1
    %s26 = scalar_select %p23, %s24, %s25
    %p29 = pneg %p23
    %p30 = scmp.eq.s32.totalorder %s14, 1
    %p31 = por %p29, %p30
    %p32 = scmp.ne.s32.totalorder %s24, %s27
    %p33 = scmp.eq.s32.totalorder %s14, 0
    %p34 = por %p32, %p33
    %p35 = scmp.ne.s32.totalorder %s24, %s27
    %p36 = scmp.eq.s32.totalorder %s19, 1
    %p37 = por %p35, %p36
    %p38 = scmp.ne.s32.totalorder %s27, %s28
    %p39 = scmp.eq.s32.totalorder %s19, 0
    %p40 = por %p38, %p39
    %p41 = scmp.ne.s32.totalorder %s27, %s28
    %p42 = scmp.eq.s32.totalorder %s20, 1
    %p43 = por %p41, %p42
    %p45 = scmp.ne.s32.totalorder %s28, %s44
    %p46 = scmp.eq.s32.totalorder %s20, 0
    %p47 = por %p45, %p46
    %s49 = sadd.s32 %s48, 1
    %p52 = scmp.eq.s32.totalorder %s14, 1
    %p53 = scmp.ne.s32.totalorder %s48, %s50
    %p54 = scmp.eq.s32.totalorder %s14, 0
    %p55 = por %p53, %p54
    %p56 = scmp.ne.s32.totalorder %s48, %s50
    %p57 = scmp.eq.s32.totalorder %s19, 1
    %p58 = por %p56, %p57
    %p59 = scmp.ne.s32.totalorder %s50, %s51
    %p60 = scmp.eq.s32.totalorder %s19, 0
    %p61 = por %p59, %p60
    %p62 = scmp.ne.s32.totalorder %s50, %s51
    %p63 = scmp.eq.s32.totalorder %s20, 1
    %p64 = por %p62, %p63
    %p66 = scmp.ne.s32.totalorder %s51, %s65
    %p67 = scmp.eq.s32.totalorder %s20, 0
    %p68 = por %p66, %p67
    %s70 = sadd.s32 %s69, 1
    %p73 = scmp.eq.s32.totalorder %s14, 1
    %p74 = scmp.ne.s32.totalorder %s69, %s71
    %p75 = scmp.eq.s32.totalorder %s14, 0
    %p76 = por %p74, %p75
    %p77 = scmp.ne.s32.totalorder %s69, %s71
    %p78 = scmp.eq.s32.totalorder %s19, 1
    %p79 = por %p77, %p78
    %p80 = scmp.ne.s32.totalorder %s71, %s72
    %p81 = scmp.eq.s32.totalorder %s19, 0
    %p82 = por %p80, %p81
    %p83 = scmp.ne.s32.totalorder %s71, %s72
    %p84 = scmp.eq.s32.totalorder %s20, 1
    %p85 = por %p83, %p84
    %p87 = scmp.ne.s32.totalorder %s72, %s86
    %p88 = scmp.eq.s32.totalorder %s20, 0
    %p89 = por %p87, %p88
    %s91 = sadd.s32 %s90, 1
    %p94 = scmp.eq.s32.totalorder %s14, 1
    %p95 = scmp.ne.s32.totalorder %s90, %s92
    %p96 = scmp.eq.s32.totalorder %s14, 0
    %p97 = por %p95, %p96
    %p98 = scmp.ne.s32.totalorder %s90, %s92
    %p99 = scmp.eq.s32.totalorder %s19, 1
    %p100 = por %p98, %p99
    %p101 = scmp.ne.s32.totalorder %s92, %s93
    %p102 = scmp.eq.s32.totalorder %s19, 0
    %p103 = por %p101, %p102
    %p104 = scmp.ne.s32.totalorder %s92, %s93
    %p105 = scmp.eq.s32.totalorder %s20, 1
    %p106 = por %p104, %p105
    %p108 = scmp.ne.s32.totalorder %s93, %s107
    %p109 = scmp.eq.s32.totalorder %s20, 0
    %p110 = por %p108, %p109
    %s112 = sadd.s32 %s111, 1
    %p115 = scmp.eq.s32.totalorder %s14, 1
    %p116 = scmp.ne.s32.totalorder %s111, %s113
    %p117 = scmp.eq.s32.totalorder %s14, 0
    %p118 = por %p116, %p117
    %p119 = scmp.ne.s32.totalorder %s111, %s113
    %p120 = scmp.eq.s32.totalorder %s19, 1
    %p121 = por %p119, %p120
    %p122 = scmp.ne.s32.totalorder %s113, %s114
    %p123 = scmp.eq.s32.totalorder %s19, 0
    %p124 = por %p122, %p123
    %p125 = scmp.ne.s32.totalorder %s113, %s114
    %p126 = scmp.eq.s32.totalorder %s20, 1
    %p127 = por %p125, %p126
    %p129 = scmp.ne.s32.totalorder %s114, %s128
    %p130 = scmp.eq.s32.totalorder %s20, 0
    %p131 = por %p129, %p130
    %s133 = sadd.s32 %s132, 1
    %p136 = scmp.eq.s32.totalorder %s14, 1
    %p137 = scmp.ne.s32.totalorder %s132, %s134
    %p138 = scmp.eq.s32.totalorder %s14, 0
    %p139 = por %p137, %p138
    %p140 = scmp.ne.s32.totalorder %s132, %s134
    %p141 = scmp.eq.s32.totalorder %s19, 1
    %p142 = por %p140, %p141
    %p143 = scmp.ne.s32.totalorder %s134, %s135
    %p144 = scmp.eq.s32.totalorder %s19, 0
    %p145 = por %p143, %p144
    %p146 = scmp.ne.s32.totalorder %s134, %s135
    %p147 = scmp.eq.s32.totalorder %s20, 1
    %p148 = por %p146, %p147
    %p150 = scmp.ne.s32.totalorder %s135, %s149
    %p151 = scmp.eq.s32.totalorder %s20, 0
    %p152 = por %p150, %p151
    %s154 = sadd.s32 %s153, 1
    %p157 = scmp.eq.s32.totalorder %s14, 1
    %p158 = scmp.ne.s32.totalorder %s153, %s155
    %p159 = scmp.eq.s32.totalorder %s14, 0
    %p160 = por %p158, %p159
    %p161 = scmp.ne.s32.totalorder %s153, %s155
    %p162 = scmp.eq.s32.totalorder %s19, 1
    %p163 = por %p161, %p162
    %p164 = scmp.ne.s32.totalorder %s155, %s156
    %p165 = scmp.eq.s32.totalorder %s19, 0
    %p166 = por %p164, %p165
    %p167 = scmp.ne.s32.totalorder %s155, %s156
    %p168 = scmp.eq.s32.totalorder %s20, 1
    %p169 = por %p167, %p168
    %p171 = scmp.ne.s32.totalorder %s156, %s170
    %p172 = scmp.eq.s32.totalorder %s20, 0
    %p173 = por %p171, %p172
    %s175 = sadd.s32 %s174, 1
    %p178 = scmp.eq.s32.totalorder %s14, 1
    %p179 = scmp.ne.s32.totalorder %s174, %s176
    %p180 = scmp.eq.s32.totalorder %s14, 0
    %p181 = por %p179, %p180
    %p182 = scmp.ne.s32.totalorder %s174, %s176
    %p183 = scmp.eq.s32.totalorder %s19, 1
    %p184 = por %p182, %p183
    %p185 = scmp.ne.s32.totalorder %s176, %s177
    %p186 = scmp.eq.s32.totalorder %s19, 0
    %p187 = por %p185, %p186
    %p188 = scmp.ne.s32.totalorder %s176, %s177
    %p189 = scmp.eq.s32.totalorder %s20, 1
    %p190 = por %p188, %p189
    %p192 = scmp.ne.s32.totalorder %s177, %s191
    %p193 = scmp.eq.s32.totalorder %s20, 0
    %p194 = por %p192, %p193
    %s195 = ssub.s32 %s14, %s21
    %p196 = scmp.eq.s32.totalorder %s195, 0
    %s198 = sadd.s32 %s197, 1
    %s199 = scalar_select %p196, %s197, %s198
    %p202 = pneg %p196
    %p203 = scmp.eq.s32.totalorder %s14, 1
    %p204 = por %p202, %p203
    %p205 = scmp.ne.s32.totalorder %s197, %s200
    %p206 = scmp.eq.s32.totalorder %s14, 0
    %p207 = por %p205, %p206
    %p208 = scmp.ne.s32.totalorder %s197, %s200
    %p209 = scmp.eq.s32.totalorder %s19, 1
    %p210 = por %p208, %p209
    %p211 = scmp.ne.s32.totalorder %s200, %s201
    %p212 = scmp.eq.s32.totalorder %s19, 0
    %p213 = por %p211, %p212
    %p214 = scmp.ne.s32.totalorder %s200, %s201
    %p215 = scmp.eq.s32.totalorder %s20, 1
    %p216 = por %p214, %p215
    %p218 = scmp.ne.s32.totalorder %s201, %s217
    %p219 = scmp.eq.s32.totalorder %s20, 0
    %p220 = por %p218, %p219
    %p221 = scmp.le.s32.totalorder 1, %s14
    %p222 = scmp.lt.s32.totalorder %s14, 3
    %p223 = pnand %p221, %p222
    %p224 = pneg %p223
    // Predicated region
    $region9: #{segmodel_forward.1} parent=5 // pred_check
      _
    $region10: #{segmodel_forward.1} parent=5 // pred_check_branch
      %226 = sbr.rel (%p223) target = $region12
    $region11: #{segmodel_forward.1} parent=5 // pred_region
      %s227 = ssub.s32 %s14, 1
      // Predicated region
      $region13: #{segmodel_forward.1} parent=11 // pred_check
        %p228 = pneg %p61
      $region14: #{segmodel_forward.1} parent=11 // pred_check_branch
        %230 = sbr.rel (%p228) target = $region16
      $region15: #{segmodel_forward.1} parent=11 // pred_region
        _
      $region16: #{segmodel_forward.1} parent=11 // pred_fallthru
        _
      // Predicated region
      $region17: #{segmodel_forward.1} parent=11 // pred_check
        %p231 = pneg %p82
      $region18: #{segmodel_forward.1} parent=11 // pred_check_branch
        %233 = sbr.rel (%p231) target = $region20
      $region19: #{segmodel_forward.1} parent=11 // pred_region
        _
      $region20: #{segmodel_forward.1} parent=11 // pred_fallthru
        _
      // Predicated region
      $region21: #{segmodel_forward.1} parent=11 // pred_check
        %p234 = pneg %p103
      $region22: #{segmodel_forward.1} parent=11 // pred_check_branch
        %236 = sbr.rel (%p234) target = $region24
      $region23: #{segmodel_forward.1} parent=11 // pred_region
        _
      $region24: #{segmodel_forward.1} parent=11 // pred_fallthru
        _
      // Predicated region
      $region25: #{segmodel_forward.1} parent=11 // pred_check
        %p237 = pneg %p124
      $region26: #{segmodel_forward.1} parent=11 // pred_check_branch
        %239 = sbr.rel (%p237) target = $region28
      $region27: #{segmodel_forward.1} parent=11 // pred_region
        _
      $region28: #{segmodel_forward.1} parent=11 // pred_fallthru
        _
      // Predicated region
      $region29: #{segmodel_forward.1} parent=11 // pred_check
        %p240 = pneg %p145
      $region30: #{segmodel_forward.1} parent=11 // pred_check_branch
        %242 = sbr.rel (%p240) target = $region32
      $region31: #{segmodel_forward.1} parent=11 // pred_region
        _
      $region32: #{segmodel_forward.1} parent=11 // pred_fallthru
        _
      // Predicated region
      $region33: #{segmodel_forward.1} parent=11 // pred_check
        %p243 = pneg %p166
      $region34: #{segmodel_forward.1} parent=11 // pred_check_branch
        %245 = sbr.rel (%p243) target = $region36
      $region35: #{segmodel_forward.1} parent=11 // pred_region
        _
      $region36: #{segmodel_forward.1} parent=11 // pred_fallthru
        _
      // Predicated region
      $region37: #{segmodel_forward.1} parent=11 // pred_check
        %p246 = pneg %p187
      $region38: #{segmodel_forward.1} parent=11 // pred_check_branch
        %248 = sbr.rel (%p246) target = $region40
      $region39: #{segmodel_forward.1} parent=11 // pred_region
        _
      $region40: #{segmodel_forward.1} parent=11 // pred_fallthru
        _
    $region12: #{segmodel_forward.1} parent=5 // pred_fallthru
      _
    %p249 = scmp.lt.s32.totalorder %s14, 2
    // Predicated region
    $region41: #{segmodel_forward.1} parent=5 // pred_check
      %p250 = pneg %p249
    $region42: #{segmodel_forward.1} parent=5 // pred_check_branch
      %252 = sbr.rel (%p250) target = $region44
    $region43: #{segmodel_forward.1} parent=5 // pred_region
      // Predicated region
      $region45: #{segmodel_forward.1} parent=43 // pred_check
        %p253 = pneg %p34
      $region46: #{segmodel_forward.1} parent=43 // pred_check_branch
        %255 = sbr.rel (%p253) target = $region48
      $region47: #{segmodel_forward.1} parent=43 // pred_region
        %p256 = scmp.lt.s32.totalorder %s14, 1
        %s257 = scalar_select %p256, %s14, 1
        %s258 = smul.addr %s257, 5
        %s259 = smul.addr %s258, 2
        %s260 = scalar_lea.vmem %s0, %s259
      $region48: #{segmodel_forward.1} parent=43 // pred_fallthru
        _
    $region44: #{segmodel_forward.1} parent=5 // pred_fallthru
      _
    %p261 = scmp.le.s32.totalorder 1, %s14
    %p262 = scmp.lt.s32.totalorder %s14, 3
    %p263 = pnand %p261, %p262
    %p264 = pneg %p263
    // Predicated region
    $region49: #{segmodel_forward.1} parent=5 // pred_check
      _
    $region50: #{segmodel_forward.1} parent=5 // pred_check_branch
      %266 = sbr.rel (%p263) target = $region52
    $region51: #{segmodel_forward.1} parent=5 // pred_region
      %s267 = ssub.s32 %s14, 1
      %p268 = scmp.lt.s32.totalorder %s19, 1
      %s269 = scalar_select %p268, %s19, 1
      %s270 = smul.addr %s269, 5
      %s271 = smul.addr %s270, 2
      %s272 = scalar_lea.vmem %s0, %s271
      %p273 = pneg %p40
      %p274 = pneg %p37
      %p275 = pneg %p61
      %p276 = pneg %p58
      %p277 = pneg %p82
      %p278 = pneg %p79
      %p279 = pneg %p103
      %p280 = pneg %p100
      %p281 = pneg %p124
      %p282 = pneg %p121
      %p283 = pneg %p145
      %p284 = pneg %p142
      %p285 = pneg %p166
      %p286 = pneg %p163
      %p287 = pneg %p187
      %p288 = pneg %p184
      %p289 = pneg %p213
      %p290 = pneg %p210
      %p291 = scmp.lt.s32.totalorder %s19, 1
      %s292 = scalar_select %p291, %s19, 1
      %s293 = smul.addr %s292, 3
      %s294 = smul.addr %s293, 2
      %s295 = scalar_lea.vmem %s8, %s294
      %p296 = scmp.lt.s32.totalorder %s19, 1
      %s297 = scalar_select %p296, %s19, 1
      %s298 = smul.addr %s297, 5
      %s299 = smul.addr %s298, 2
      %s300 = scalar_lea.vmem %s0, %s299
      %p301 = scmp.lt.s32.totalorder %s19, 1
      %s302 = scalar_select %p301, %s19, 1
      %s303 = smul.addr %s302, 3
      %s304 = smul.addr %s303, 2
      %s305 = scalar_lea.vmem %s8, %s304
      %v307 = vld [vmem:[%s300] sm:$0xff]
      %v309 = vcombine.high %v307, %v307
      %v311 = vunpack.c.l.s4 1983009808
      %v312 = vunpack.c.0.s8 %v311
      %v313 = vlaneseq
      %v314 = vshrl.u32 %v313, 7
      %v315 = vsub.s32 %v312, %v314
      %v316 = vrot.slane %v307, %v315
      %v318 = vunpack.c.l.s4 1983009808
      %v319 = vunpack.c.0.s8 %v318
      %v320 = vlaneseq
      %v321 = vshrl.u32 %v320, 7
      %v322 = vsub.s32 %v319, %v321
      %v323 = vrot.slane %v309, %v322
      %324 = vrot.lane.b32.xlu0 %v316, 19
      %v325 = vpop.permute.xlu0 %324
      %326 = vrot.lane.b32.xlu0 %v323, 19
      %v327 = vpop.permute.xlu0 %326
      %v328 = vrot.slane %v325, 4
      %v329 = vrot.slane %v327, 4
      %vm330 = vcmask 1043456
      %v331 = vsel %vm330, %v328, %v329
      %vm332 = vcmask 154624
      %v333 = vsel %vm332, %v325, %v331
      %v334 = vsel %vm332, %v327, %v329
      %337 = vst [vmem:[#allocation2] sm:$0x33] %v333
      %338 = vst [vmem:[#allocation2 + $0x8] sm:$0x3] %v334
      %v339 = vld [vmem:[%s300] sm:$0xff]
      %v341 = vcombine.low %v339, %v339
      %v343 = vunpack.c.l.s4 1983009808
      %v344 = vunpack.c.0.s8 %v343
      %v345 = vlaneseq
      %v346 = vshrl.u32 %v345, 7
      %v347 = vsub.s32 %v344, %v346
      %v348 = vrot.slane %v341, %v347
      %v350 = vunpack.c.l.s4 1983009808
      %v351 = vunpack.c.0.s8 %v350
      %v352 = vlaneseq
      %v353 = vshrl.u32 %v352, 7
      %v354 = vsub.s32 %v351, %v353
      %v355 = vrot.slane %v339, %v354
      %356 = vrot.lane.b32.xlu0 %v348, 18
      %v357 = vpop.permute.xlu0 %356
      %358 = vrot.lane.b32.xlu0 %v355, 18
      %v359 = vpop.permute.xlu0 %358
      %v360 = vrot.slane %v357, 4
      %v361 = vrot.slane %v359, 4
      %v362 = vsel %vm330, %v360, %v361
      %vm363 = vcmask 146432
      %v364 = vsel %vm363, %v357, %v362
      %v365 = vsel %vm363, %v359, %v361
      %368 = vst [vmem:[#allocation2] sm:$0xcc] %v364
      %369 = vst [vmem:[#allocation2 + $0x8] sm:$0xc] %v365
      %v370 = vld [vmem:[%s300] sm:$0xff]
      %v372 = vcombine.high %v370, %v370
      %v374 = vunpack.c.l.s4 1983009808
      %v375 = vunpack.c.0.s8 %v374
      %v376 = vlaneseq
      %v377 = vshrl.u32 %v376, 7
      %v378 = vsub.s32 %v375, %v377
      %v379 = vrot.slane %v370, %v378
      %v381 = vunpack.c.l.s4 1983009808
      %v382 = vunpack.c.0.s8 %v381
      %v383 = vlaneseq
      %v384 = vshrl.u32 %v383, 7
      %v385 = vsub.s32 %v382, %v384
      %v386 = vrot.slane %v372, %v385
      %387 = vrot.lane.b32.xlu0 %v379, 17
      %v388 = vpop.permute.xlu0 %387
      %389 = vrot.lane.b32.xlu0 %v386, 17
      %v390 = vpop.permute.xlu0 %389
      %v391 = vrot.slane %v388, 4
      %v392 = vrot.slane %v390, 4
      %v393 = vsel %vm330, %v391, %v392
      %vm394 = vcmask 138240
      %v395 = vsel %vm394, %v388, %v393
      %v396 = vsel %vm394, %v390, %v392
      %399 = vst [vmem:[#allocation2 + $0xc] sm:$0x33] %v395
      %400 = vst [vmem:[#allocation2 + $0x14] sm:$0x3] %v396
      %v401 = vld [vmem:[%s300] sm:$0xff]
      %v403 = vcombine.low %v401, %v401
      %v405 = vunpack.c.l.s4 1983009808
      %v406 = vunpack.c.0.s8 %v405
      %v407 = vlaneseq
      %v408 = vshrl.u32 %v407, 7
      %v409 = vsub.s32 %v406, %v408
      %v410 = vrot.slane %v403, %v409
      %v412 = vunpack.c.l.s4 1983009808
      %v413 = vunpack.c.0.s8 %v412
      %v414 = vlaneseq
      %v415 = vshrl.u32 %v414, 7
      %v416 = vsub.s32 %v413, %v415
      %v417 = vrot.slane %v401, %v416
      %418 = vrot.lane.b32.xlu0 %v410, 1
      %v419 = vpop.permute.xlu0 %418
      %420 = vrot.lane.b32.xlu0 %v417, 1
      %v421 = vpop.permute.xlu0 %420
      %v422 = vrot.slane %v419, 4
      %v423 = vrot.slane %v421, 4
      %v424 = vsel %vm330, %v422, %v423
      %vm425 = vcmask 7168
      %v426 = vsel %vm425, %v419, %v424
      %v427 = vsel %vm425, %v421, %v423
      %430 = vst [vmem:[#allocation2 + $0xc] sm:$0xcc] %v426
      %431 = vst [vmem:[#allocation2 + $0x14] sm:$0xc] %v427
      %v432 = vld [vmem:[%s300 + $0x2] sm:$0x3f]
      %v434 = vcombine.high %v432, %v432
      %v436 = vunpack.c.l.s4 1983009808
      %v437 = vunpack.c.0.s8 %v436
      %v438 = vlaneseq
      %v439 = vshrl.u32 %v438, 7
      %v440 = vsub.s32 %v437, %v439
      %v441 = vrot.slane %v432, %v440
      %v443 = vunpack.c.l.s4 1983009808
      %v444 = vunpack.c.0.s8 %v443
      %v445 = vlaneseq
      %v446 = vshrl.u32 %v445, 7
      %v447 = vsub.s32 %v444, %v446
      %v448 = vrot.slane %v434, %v447
      %451 = vst [vmem:[#allocation2 + $0x18] sm:$0x33] %v441
      %452 = vst [vmem:[#allocation2 + $0x20] sm:$0x3] %v448
      %v453 = vld [vmem:[%s300 + $0x2] sm:$0xff]
      %v455 = vcombine.low %v453, %v453
      %v457 = vunpack.c.l.s4 1983009808
      %v458 = vunpack.c.0.s8 %v457
      %v459 = vlaneseq
      %v460 = vshrl.u32 %v459, 7
      %v461 = vsub.s32 %v458, %v460
      %v462 = vrot.slane %v455, %v461
      %v464 = vunpack.c.l.s4 1983009808
      %v465 = vunpack.c.0.s8 %v464
      %v466 = vlaneseq
      %v467 = vshrl.u32 %v466, 7
      %v468 = vsub.s32 %v465, %v467
      %v469 = vrot.slane %v453, %v468
      %470 = vrot.lane.b32.xlu0 %v462, 127
      %v471 = vpop.permute.xlu0 %470
      %472 = vrot.lane.b32.xlu0 %v469, 127
      %v473 = vpop.permute.xlu0 %472
      %v474 = vrot.slane %v471, 4
      %v475 = vrot.slane %v473, 4
      %v476 = vsel %vm330, %v474, %v475
      %vm477 = vcmask 1039360
      %v478 = vsel %vm477, %v471, %v476
      %v479 = vsel %vm477, %v473, %v475
      %482 = vst [vmem:[#allocation2 + $0x18] sm:$0xcc] %v478
      %483 = vst [vmem:[#allocation2 + $0x20] sm:$0xc] %v479
      %v484 = vld [vmem:[%s300 + $0x2] sm:$0xff]
      %v486 = vcombine.high %v484, %v484
      %v488 = vunpack.c.l.s4 1983009808
      %v489 = vunpack.c.0.s8 %v488
      %v490 = vlaneseq
      %v491 = vshrl.u32 %v490, 7
      %v492 = vsub.s32 %v489, %v491
      %v493 = vrot.slane %v484, %v492
      %v495 = vunpack.c.l.s4 1983009808
      %v496 = vunpack.c.0.s8 %v495
      %v497 = vlaneseq
      %v498 = vshrl.u32 %v497, 7
      %v499 = vsub.s32 %v496, %v498
      %v500 = vrot.slane %v486, %v499
      %501 = vrot.lane.b32.xlu0 %v493, 111
      %v502 = vpop.permute.xlu0 %501
      %503 = vrot.lane.b32.xlu0 %v500, 111
      %v504 = vpop.permute.xlu0 %503
      %v505 = vrot.slane %v502, 4
      %v506 = vrot.slane %v504, 4
      %v507 = vsel %vm330, %v505, %v506
      %vm508 = vcmask 908288
      %v509 = vsel %vm508, %v502, %v507
      %v510 = vsel %vm508, %v504, %v506
      %513 = vst [vmem:[#allocation2 + $0x24] sm:$0x33] %v509
      %514 = vst [vmem:[#allocation2 + $0x2c] sm:$0x3] %v510
      %v515 = vld [vmem:[%s300 + $0x2] sm:$0xff]
      %v517 = vcombine.low %v515, %v515
      %v519 = vunpack.c.l.s4 1983009808
      %v520 = vunpack.c.0.s8 %v519
      %v521 = vlaneseq
      %v522 = vshrl.u32 %v521, 7
      %v523 = vsub.s32 %v520, %v522
      %v524 = vrot.slane %v517, %v523
      %v526 = vunpack.c.l.s4 1983009808
      %v527 = vunpack.c.0.s8 %v526
      %v528 = vlaneseq
      %v529 = vshrl.u32 %v528, 7
      %v530 = vsub.s32 %v527, %v529
      %v531 = vrot.slane %v515, %v530
      %532 = vrot.lane.b32.xlu0 %v524, 110
      %v533 = vpop.permute.xlu0 %532
      %534 = vrot.lane.b32.xlu0 %v531, 110
      %v535 = vpop.permute.xlu0 %534
      %v536 = vrot.slane %v533, 4
      %v537 = vrot.slane %v535, 4
      %v538 = vsel %vm330, %v536, %v537
      %vm539 = vcmask 900096
      %v540 = vsel %vm539, %v533, %v538
      %v541 = vsel %vm539, %v535, %v537
      %544 = vst [vmem:[#allocation2 + $0x24] sm:$0xcc] %v540
      %545 = vst [vmem:[#allocation2 + $0x2c] sm:$0xc] %v541
      %v546 = vld [vmem:[%s300 + $0x2] sm:$0xff]
      %v548 = vcombine.high %v546, %v546
      %v550 = vunpack.c.l.s4 1983009808
      %v551 = vunpack.c.0.s8 %v550
      %v552 = vlaneseq
      %v553 = vshrl.u32 %v552, 7
      %v554 = vsub.s32 %v551, %v553
      %v555 = vrot.slane %v546, %v554
      %v557 = vunpack.c.l.s4 1983009808
      %v558 = vunpack.c.0.s8 %v557
      %v559 = vlaneseq
      %v560 = vshrl.u32 %v559, 7
      %v561 = vsub.s32 %v558, %v560
      %v562 = vrot.slane %v548, %v561
      %563 = vrot.lane.b32.xlu0 %v555, 109
      %v564 = vpop.permute.xlu0 %563
      %565 = vrot.lane.b32.xlu0 %v562, 109
      %v566 = vpop.permute.xlu0 %565
      %v567 = vrot.slane %v564, 4
      %v568 = vrot.slane %v566, 4
      %v569 = vsel %vm330, %v567, %v568
      %vm570 = vcmask 891904
      %v571 = vsel %vm570, %v564, %v569
      %v572 = vsel %vm570, %v566, %v568
      %575 = vst [vmem:[#allocation2 + $0x30] sm:$0x33] %v571
      %576 = vst [vmem:[#allocation2 + $0x38] sm:$0x3] %v572
      %v577 = vld [vmem:[%s1] sm:$0xf]
      %v578 = vld [vmem:[#allocation2] sm:$0xff]
      %v579 = vld [vmem:[#allocation2 + $0x8] sm:$0xf]
      %v580 = vld [vmem:[#allocation2 + $0xc] sm:$0xff]
      %v581 = vld [vmem:[#allocation2 + $0x14] sm:$0xf]
      %v582 = vld [vmem:[#allocation2 + $0x18] sm:$0xff]
      %v583 = vld [vmem:[#allocation2 + $0x20] sm:$0xf]
      %v584 = vld [vmem:[#allocation2 + $0x24] sm:$0xff]
      %v585 = vld [vmem:[#allocation2 + $0x2c] sm:$0xf]
      %v586 = vld [vmem:[#allocation2 + $0x30] sm:$0x33]
      %v587 = vld [vmem:[#allocation2 + $0x38] sm:$0x3]
      %v588 = vld [vmem:[%s2] sm:$0xff]
      %590 = vset.pattern.permute.xlu0 0
      %591 = vperm.xlu0 %590, %v588
      %v592 = vpop.permute.xlu0 %591
      %v604 = vunpack.c.l.b16 %v578
      %v605 = vunpack.c.h.b16 %v578
      %v606 = vunpack.c.l.b16 %v579
      %v607 = vunpack.c.l.b16 %v580
      %v608 = vunpack.c.h.b16 %v580
      %v609 = vunpack.c.l.b16 %v581
      %v610 = vunpack.c.l.b16 %v582
      %v611 = vunpack.c.h.b16 %v582
      %v612 = vunpack.c.l.b16 %v583
      %v613 = vunpack.c.l.b16 %v584
      %v614 = vunpack.c.h.b16 %v584
      %v615 = vunpack.c.l.b16 %v585
      %v616 = vunpack.c.l.b16 %v586
      %v617 = vunpack.c.h.b16 %v586
      %v618 = vunpack.c.l.b16 %v587
      %v619 = vpack.c.b16 %v607, %v604
      %v620 = vpack.c.b16 %v608, %v605
      %v621 = vpack.c.b16 %v609, %v606
      %v622 = vpack.c.b16 %v613, %v610
      %v623 = vpack.c.b16 %v614, %v611
      %v624 = vpack.c.b16 %v615, %v612
      %v625 = vpack.c.b16 %v616, %v616
      %v626 = vpack.c.b16 %v617, %v617
      %v627 = vpack.c.b16 %v618, %v618
      %vm634 = vcmask 293888
      %v636 = vsel %vm634, %v577, 0
      %vm638 = vcmask 1041408
      %v640 = vsel %vm638, %v625, 0
      %v643 = vsel %vm638, %v626, 0
      %v646 = vsel %vm638, %v627, 0
      %648 = vmatprep.subr.bf16.mxu0 0
      %649 = vmatpush1.bf16.msra.mxu0 0
      %650 = vmatprep.subr.bf16.mxu0 0
      %651 = vmatpush1.bf16.msra.mxu0 0
      %652 = vmatprep.subr.bf16.mxu0 0
      %653 = vmatpush1.bf16.msra.mxu0 0
      %654 = vmatprep.subr.bf16.mxu0 0
      %655 = vmatpush1.bf16.msra.mxu0 0
      %656 = vmatprep.subr.bf16.mxu0 0
      %657 = vmatpush1.bf16.msra.mxu0 0
      %658 = vmatprep.subr.bf16.mxu0 %v643
      %659 = vmatpush1.bf16.msra.mxu0 %v640
      %660 = vmatprep.subr.bf16.mxu0 %v623
      %661 = vmatpush1.bf16.msra.mxu0 %v622
      %662 = vmatprep.subr.bf16.mxu0 %v620
      %663 = vmatpush1.bf16.msra.mxu0 %v619
      %664 = vmatprep.subr.bf16.mxu0 0
      %665 = vmatpush2.bf16.msra.mxu0 0
      %666 = vmatprep.subr.bf16.mxu0 0
      %667 = vmatpush2.bf16.msra.mxu0 0
      %668 = vmatprep.subr.bf16.mxu0 0
      %669 = vmatpush2.bf16.msra.mxu0 0
      %670 = vmatprep.subr.bf16.mxu0 0
      %671 = vmatpush2.bf16.msra.mxu0 0
      %672 = vmatprep.subr.bf16.mxu0 0
      %673 = vmatpush2.bf16.msra.mxu0 0
      %674 = vmatprep.subr.bf16.mxu0 0
      %675 = vmatpush2.bf16.msra.mxu0 0
      %676 = vmatprep.subr.bf16.mxu0 0
      %677 = vmatpush2.bf16.msra.mxu0 0
      %678 = vmatprep.subr.bf16.mxu0 0
      %679 = vmatpush2.bf16.msra.mxu0 0
      %680 = vmatprep.mubr.bf16.mxu0 0
      %681 = vmatmul.mubr.bf16.gmra.mxu0 %v636
      %v682 = vpop.f32.mrf.mxu0
      %v683 = vadd.f32 %v592, %v682
      %v684 = vpop.f32.mrf.mxu0
      %v685 = vadd.f32 %v592, %v684
      %v686 = vpop.f32.mrf.mxu0
      %v687 = vpop.f32.mrf.mxu0
      %688 = vdwg.mxu0
      %689 = vmatprep.subr.bf16.mxu0 0
      %690 = vmatpush1.bf16.msra.mxu0 0
      %691 = vmatprep.subr.bf16.mxu0 0
      %692 = vmatpush1.bf16.msra.mxu0 0
      %693 = vmatprep.subr.bf16.mxu0 0
      %694 = vmatpush1.bf16.msra.mxu0 0
      %695 = vmatprep.subr.bf16.mxu0 0
      %696 = vmatpush1.bf16.msra.mxu0 0
      %697 = vmatprep.subr.bf16.mxu0 0
      %698 = vmatpush1.bf16.msra.mxu0 0
      %699 = vmatprep.subr.bf16.mxu0 0
      %700 = vmatpush1.bf16.msra.mxu0 %v646
      %701 = vmatprep.subr.bf16.mxu0 0
      %702 = vmatpush1.bf16.msra.mxu0 %v624
      %703 = vmatprep.subr.bf16.mxu0 0
      %704 = vmatpush1.bf16.msra.mxu0 %v621
      %705 = vmatprep.subr.bf16.mxu0 0
      %706 = vmatpush2.bf16.msra.mxu0 0
      %707 = vmatprep.subr.bf16.mxu0 0
      %708 = vmatpush2.bf16.msra.mxu0 0
      %709 = vmatprep.subr.bf16.mxu0 0
      %710 = vmatpush2.bf16.msra.mxu0 0
      %711 = vmatprep.subr.bf16.mxu0 0
      %712 = vmatpush2.bf16.msra.mxu0 0
      %713 = vmatprep.subr.bf16.mxu0 0
      %714 = vmatpush2.bf16.msra.mxu0 0
      %715 = vmatprep.subr.bf16.mxu0 0
      %716 = vmatpush2.bf16.msra.mxu0 0
      %717 = vmatprep.subr.bf16.mxu0 0
      %718 = vmatpush2.bf16.msra.mxu0 0
      %719 = vmatprep.subr.bf16.mxu0 0
      %720 = vmatpush2.bf16.msra.mxu0 0
      %721 = vmatprep.mubr.bf16.mxu0 0
      %722 = vmatmul.mubr.bf16.gmra.mxu0 %v636
      %v723 = vpop.f32.mrf.mxu0
      %v724 = vadd.f32 %v592, %v723
      %v725 = vpop.f32.mrf.mxu0
      %v726 = vpop.f32.mrf.mxu0
      %v727 = vpop.f32.mrf.mxu0
      %728 = vdwg.mxu0
      %v729 = vmax.f32 %v683, 0.0
      %v730 = vmax.f32 %v685, 0.0
      %v731 = vmax.f32 %v724, 0.0
      %v732 = vld [vmem:[%s7] sm:$0x7]
      %v734 = vlaneseq
      %v735 = vshrl.u32 %v734, 7
      %v736 = vsub.s32 0, %v735
      %v737 = vrot.slane %v732, %v736
      %v738 = vlaneseq
      %v739 = vshrl.u32 %v738, 7
      %v740 = vsub.s32 1, %v739
      %v741 = vrot.slane %v732, %v740
      %v742 = vlaneseq
      %v743 = vshrl.u32 %v742, 7
      %v744 = vsub.s32 2, %v743
      %v745 = vrot.slane %v732, %v744
      %v749 = vmul.f32 %v729, %v737
      %v750 = vmul.f32 %v730, %v741
      %v751 = vmul.f32 %v731, %v745
      %752 = vst [vmem:[#allocation3] sm:$0xf] 0
      %753 = vst [vmem:[#allocation3 + $0x10] sm:$0xf] 0
      %v754 = vpack.c.bf16 %v749, %v749
      %v755 = vpack.c.bf16 %v750, %v750
      %v756 = vpack.c.bf16 %v751, %v751
      %v760 = vunpack.c.l.b16 %v754
      %v761 = vunpack.c.l.b16 %v755
      %v762 = vunpack.c.l.b16 %v756
      %v763 = vpack.c.b16 %v761, %v760
      %v764 = vpack.c.b16 %v762, %v762
      %767 = vst [vmem:[#allocation3 + $0x4] sm:$0xff] %v763
      %768 = vst [vmem:[#allocation3 + $0xc] sm:$0xf] %v764
      %v769 = vld [vmem:[#allocation3] sm:$0xff]
      %v770 = vld [vmem:[#allocation3 + $0x8] sm:$0xff]
      %773 = vrot.lane.b32.xlu0 %v769, 19
      %v774 = vpop.permute.xlu0 %773
      %775 = vrot.lane.b32.xlu0 %v770, 19
      %v776 = vpop.permute.xlu0 %775
      %v777 = vrot.slane %v774, 4
      %v778 = vrot.slane %v776, 4
      %v779 = vsel %vm330, %v777, %v778
      %v780 = vsel %vm332, %v774, %v779
      %v781 = vsel %vm332, %v776, %v778
      %784 = vst [vmem:[#allocation4] sm:$0xff] %v780
      %785 = vst [vmem:[#allocation4 + $0x8] sm:$0xf] %v781
      %v786 = vld [vmem:[#allocation3] sm:$0xff]
      %v787 = vld [vmem:[#allocation3 + $0x8] sm:$0xff]
      %790 = vrot.lane.b32.xlu0 %v786, 18
      %v791 = vpop.permute.xlu0 %790
      %792 = vrot.lane.b32.xlu0 %v787, 18
      %v793 = vpop.permute.xlu0 %792
      %v794 = vrot.slane %v791, 4
      %v795 = vrot.slane %v793, 4
      %v796 = vsel %vm330, %v794, %v795
      %v797 = vsel %vm363, %v791, %v796
      %v798 = vsel %vm363, %v793, %v795
      %801 = vst [vmem:[#allocation4 + $0xc] sm:$0xff] %v797
      %802 = vst [vmem:[#allocation4 + $0x14] sm:$0xf] %v798
      %v803 = vld [vmem:[#allocation3] sm:$0xff]
      %v804 = vld [vmem:[#allocation3 + $0x8] sm:$0xff]
      %807 = vrot.lane.b32.xlu0 %v803, 17
      %v808 = vpop.permute.xlu0 %807
      %809 = vrot.lane.b32.xlu0 %v804, 17
      %v810 = vpop.permute.xlu0 %809
      %v811 = vrot.slane %v808, 4
      %v812 = vrot.slane %v810, 4
      %v813 = vsel %vm330, %v811, %v812
      %v814 = vsel %vm394, %v808, %v813
      %v815 = vsel %vm394, %v810, %v812
      %818 = vst [vmem:[#allocation4 + $0x18] sm:$0xff] %v814
      %819 = vst [vmem:[#allocation4 + $0x20] sm:$0xf] %v815
      %v820 = vld [vmem:[#allocation3] sm:$0xff]
      %v821 = vld [vmem:[#allocation3 + $0x8] sm:$0xff]
      %824 = vrot.lane.b32.xlu0 %v820, 1
      %v825 = vpop.permute.xlu0 %824
      %826 = vrot.lane.b32.xlu0 %v821, 1
      %v827 = vpop.permute.xlu0 %826
      %v828 = vrot.slane %v825, 4
      %v829 = vrot.slane %v827, 4
      %v830 = vsel %vm330, %v828, %v829
      %v831 = vsel %vm425, %v825, %v830
      %v832 = vsel %vm425, %v827, %v829
      %835 = vst [vmem:[#allocation4 + $0x24] sm:$0xff] %v831
      %836 = vst [vmem:[#allocation4 + $0x2c] sm:$0xf] %v832
      %v837 = vld [vmem:[#allocation3 + $0x4] sm:$0xff]
      %v838 = vld [vmem:[#allocation3 + $0xc] sm:$0xf]
      %839 = vst [vmem:[#allocation4 + $0x30] sm:$0xff] %v837
      %840 = vst [vmem:[#allocation4 + $0x38] sm:$0xf] %v838
      %v841 = vld [vmem:[#allocation3 + $0x4] sm:$0xff]
      %v842 = vld [vmem:[#allocation3 + $0xc] sm:$0xff]
      %845 = vrot.lane.b32.xlu0 %v841, 127
      %v846 = vpop.permute.xlu0 %845
      %847 = vrot.lane.b32.xlu0 %v842, 127
      %v848 = vpop.permute.xlu0 %847
      %v849 = vrot.slane %v846, 4
      %v850 = vrot.slane %v848, 4
      %v851 = vsel %vm330, %v849, %v850
      %v852 = vsel %vm477, %v846, %v851
      %v853 = vsel %vm477, %v848, %v850
      %856 = vst [vmem:[#allocation4 + $0x3c] sm:$0xff] %v852
      %857 = vst [vmem:[#allocation4 + $0x44] sm:$0xf] %v853
      %v858 = vld [vmem:[#allocation3 + $0x4] sm:$0xff]
      %v859 = vld [vmem:[#allocation3 + $0xc] sm:$0xff]
      %862 = vrot.lane.b32.xlu0 %v858, 111
      %v863 = vpop.permute.xlu0 %862
      %864 = vrot.lane.b32.xlu0 %v859, 111
      %v865 = vpop.permute.xlu0 %864
      %v866 = vrot.slane %v863, 4
      %v867 = vrot.slane %v865, 4
      %v868 = vsel %vm330, %v866, %v867
      %v869 = vsel %vm508, %v863, %v868
      %v870 = vsel %vm508, %v865, %v867
      %873 = vst [vmem:[#allocation4 + $0x48] sm:$0xff] %v869
      %874 = vst [vmem:[#allocation4 + $0x50] sm:$0xf] %v870
      %v875 = vld [vmem:[#allocation3 + $0x4] sm:$0xff]
      %v876 = vld [vmem:[#allocation3 + $0xc] sm:$0xff]
      %879 = vrot.lane.b32.xlu0 %v875, 110
      %v880 = vpop.permute.xlu0 %879
      %881 = vrot.lane.b32.xlu0 %v876, 110
      %v882 = vpop.permute.xlu0 %881
      %v883 = vrot.slane %v880, 4
      %v884 = vrot.slane %v882, 4
      %v885 = vsel %vm330, %v883, %v884
      %v886 = vsel %vm539, %v880, %v885
      %v887 = vsel %vm539, %v882, %v884
      %890 = vst [vmem:[#allocation4 + $0x54] sm:$0xff] %v886
      %891 = vst [vmem:[#allocation4 + $0x5c] sm:$0xf] %v887
      %v892 = vld [vmem:[#allocation3 + $0x4] sm:$0xff]
      %v893 = vld [vmem:[#allocation3 + $0xc] sm:$0xff]
      %896 = vrot.lane.b32.xlu0 %v892, 109
      %v897 = vpop.permute.xlu0 %896
      %898 = vrot.lane.b32.xlu0 %v893, 109
      %v899 = vpop.permute.xlu0 %898
      %v900 = vrot.slane %v897, 4
      %v901 = vrot.slane %v899, 4
      %v902 = vsel %vm330, %v900, %v901
      %v903 = vsel %vm570, %v897, %v902
      %v904 = vsel %vm570, %v899, %v901
      %907 = vst [vmem:[#allocation4 + $0x60] sm:$0xff] %v903
      %908 = vst [vmem:[#allocation4 + $0x68] sm:$0xf] %v904
      %v909 = vld [vmem:[%s3] sm:$0xf]
      %v910 = vld [vmem:[#allocation4] sm:$0xff]
      %v911 = vld [vmem:[#allocation4 + $0x8] sm:$0xf]
      %v912 = vld [vmem:[#allocation4 + $0xc] sm:$0xff]
      %v913 = vld [vmem:[#allocation4 + $0x14] sm:$0xf]
      %v914 = vld [vmem:[#allocation4 + $0x18] sm:$0xff]
      %v915 = vld [vmem:[#allocation4 + $0x20] sm:$0xf]
      %v916 = vld [vmem:[#allocation4 + $0x24] sm:$0xff]
      %v917 = vld [vmem:[#allocation4 + $0x2c] sm:$0xf]
      %v918 = vld [vmem:[#allocation4 + $0x30] sm:$0xff]
      %v919 = vld [vmem:[#allocation4 + $0x38] sm:$0xf]
      %v920 = vld [vmem:[#allocation4 + $0x3c] sm:$0xff]
      %v921 = vld [vmem:[#allocation4 + $0x44] sm:$0xf]
      %v922 = vld [vmem:[#allocation4 + $0x48] sm:$0xff]
      %v923 = vld [vmem:[#allocation4 + $0x50] sm:$0xf]
      %v924 = vld [vmem:[#allocation4 + $0x54] sm:$0xff]
      %v925 = vld [vmem:[#allocation4 + $0x5c] sm:$0xf]
      %v926 = vld [vmem:[#allocation4 + $0x60] sm:$0xff]
      %v927 = vld [vmem:[#allocation4 + $0x68] sm:$0xf]
      %v928 = vld [vmem:[%s4] sm:$0xff]
      %930 = vset.pattern.permute.xlu0 0
      %931 = vperm.xlu0 %930, %v928
      %v932 = vpop.permute.xlu0 %931
      %v952 = vunpack.c.l.b16 %v910
      %v953 = vunpack.c.h.b16 %v910
      %v954 = vunpack.c.l.b16 %v911
      %v955 = vunpack.c.l.b16 %v912
      %v956 = vunpack.c.h.b16 %v912
      %v957 = vunpack.c.l.b16 %v913
      %v958 = vunpack.c.l.b16 %v914
      %v959 = vunpack.c.h.b16 %v914
      %v960 = vunpack.c.l.b16 %v915
      %v961 = vunpack.c.l.b16 %v916
      %v962 = vunpack.c.h.b16 %v916
      %v963 = vunpack.c.l.b16 %v917
      %v964 = vunpack.c.l.b16 %v918
      %v965 = vunpack.c.h.b16 %v918
      %v966 = vunpack.c.l.b16 %v919
      %v967 = vunpack.c.l.b16 %v920
      %v968 = vunpack.c.h.b16 %v920
      %v969 = vunpack.c.l.b16 %v921
      %v970 = vunpack.c.l.b16 %v922
      %v971 = vunpack.c.h.b16 %v922
      %v972 = vunpack.c.l.b16 %v923
      %v973 = vunpack.c.l.b16 %v924
      %v974 = vunpack.c.h.b16 %v924
      %v975 = vunpack.c.l.b16 %v925
      %v976 = vunpack.c.l.b16 %v926
      %v977 = vunpack.c.h.b16 %v926
      %v978 = vunpack.c.l.b16 %v927
      %v979 = vpack.c.b16 %v955, %v952
      %v980 = vpack.c.b16 %v956, %v953
      %v981 = vpack.c.b16 %v957, %v954
      %v982 = vpack.c.b16 %v961, %v958
      %v983 = vpack.c.b16 %v962, %v959
      %v984 = vpack.c.b16 %v963, %v960
      %v985 = vpack.c.b16 %v967, %v964
      %v986 = vpack.c.b16 %v968, %v965
      %v987 = vpack.c.b16 %v969, %v966
      %v988 = vpack.c.b16 %v973, %v970
      %v989 = vpack.c.b16 %v974, %v971
      %v990 = vpack.c.b16 %v975, %v972
      %v991 = vpack.c.b16 %v976, %v976
      %v992 = vpack.c.b16 %v977, %v977
      %v993 = vpack.c.b16 %v978, %v978
      %vm1006 = vcmask 588800
      %v1008 = vsel %vm1006, %v909, 0
      %vm1010 = vcmask 1043456
      %v1012 = vsel %vm1010, %v991, 0
      %v1015 = vsel %vm1010, %v992, 0
      %v1018 = vsel %vm1010, %v993, 0
      %1020 = vmatprep.subr.bf16.mxu0 0
      %1021 = vmatpush1.bf16.msra.mxu0 0
      %1022 = vmatprep.subr.bf16.mxu0 0
      %1023 = vmatpush1.bf16.msra.mxu0 0
      %1024 = vmatprep.subr.bf16.mxu0 0
      %1025 = vmatpush1.bf16.msra.mxu0 0
      %1026 = vmatprep.subr.bf16.mxu0 %v1015
      %1027 = vmatpush1.bf16.msra.mxu0 %v1012
      %1028 = vmatprep.subr.bf16.mxu0 %v989
      %1029 = vmatpush1.bf16.msra.mxu0 %v988
      %1030 = vmatprep.subr.bf16.mxu0 %v986
      %1031 = vmatpush1.bf16.msra.mxu0 %v985
      %1032 = vmatprep.subr.bf16.mxu0 %v983
      %1033 = vmatpush1.bf16.msra.mxu0 %v982
      %1034 = vmatprep.subr.bf16.mxu0 %v980
      %1035 = vmatpush1.bf16.msra.mxu0 %v979
      %1036 = vmatprep.subr.bf16.mxu0 0
      %1037 = vmatpush2.bf16.msra.mxu0 0
      %1038 = vmatprep.subr.bf16.mxu0 0
      %1039 = vmatpush2.bf16.msra.mxu0 0
      %1040 = vmatprep.subr.bf16.mxu0 0
      %1041 = vmatpush2.bf16.msra.mxu0 0
      %1042 = vmatprep.subr.bf16.mxu0 0
      %1043 = vmatpush2.bf16.msra.mxu0 0
      %1044 = vmatprep.subr.bf16.mxu0 0
      %1045 = vmatpush2.bf16.msra.mxu0 0
      %1046 = vmatprep.subr.bf16.mxu0 0
      %1047 = vmatpush2.bf16.msra.mxu0 0
      %1048 = vmatprep.subr.bf16.mxu0 0
      %1049 = vmatpush2.bf16.msra.mxu0 0
      %1050 = vmatprep.subr.bf16.mxu0 0
      %1051 = vmatpush2.bf16.msra.mxu0 0
      %1052 = vmatprep.mubr.bf16.mxu0 0
      %1053 = vmatmul.mubr.bf16.gmra.mxu0 %v1008
      %v1054 = vpop.f32.mrf.mxu0
      %v1055 = vadd.f32 %v932, %v1054
      %v1056 = vpop.f32.mrf.mxu0
      %v1057 = vadd.f32 %v932, %v1056
      %v1058 = vpop.f32.mrf.mxu0
      %v1059 = vpop.f32.mrf.mxu0
      %1060 = vdwg.mxu0
      %1061 = vmatprep.subr.bf16.mxu0 0
      %1062 = vmatpush1.bf16.msra.mxu0 0
      %1063 = vmatprep.subr.bf16.mxu0 0
      %1064 = vmatpush1.bf16.msra.mxu0 0
      %1065 = vmatprep.subr.bf16.mxu0 0
      %1066 = vmatpush1.bf16.msra.mxu0 0
      %1067 = vmatprep.subr.bf16.mxu0 0
      %1068 = vmatpush1.bf16.msra.mxu0 %v1018
      %1069 = vmatprep.subr.bf16.mxu0 0
      %1070 = vmatpush1.bf16.msra.mxu0 %v990
      %1071 = vmatprep.subr.bf16.mxu0 0
      %1072 = vmatpush1.bf16.msra.mxu0 %v987
      %1073 = vmatprep.subr.bf16.mxu0 0
      %1074 = vmatpush1.bf16.msra.mxu0 %v984
      %1075 = vmatprep.subr.bf16.mxu0 0
      %1076 = vmatpush1.bf16.msra.mxu0 %v981
      %1077 = vmatprep.subr.bf16.mxu0 0
      %1078 = vmatpush2.bf16.msra.mxu0 0
      %1079 = vmatprep.subr.bf16.mxu0 0
      %1080 = vmatpush2.bf16.msra.mxu0 0
      %1081 = vmatprep.subr.bf16.mxu0 0
      %1082 = vmatpush2.bf16.msra.mxu0 0
      %1083 = vmatprep.subr.bf16.mxu0 0
      %1084 = vmatpush2.bf16.msra.mxu0 0
      %1085 = vmatprep.subr.bf16.mxu0 0
      %1086 = vmatpush2.bf16.msra.mxu0 0
      %1087 = vmatprep.subr.bf16.mxu0 0
      %1088 = vmatpush2.bf16.msra.mxu0 0
      %1089 = vmatprep.subr.bf16.mxu0 0
      %1090 = vmatpush2.bf16.msra.mxu0 0
      %1091 = vmatprep.subr.bf16.mxu0 0
      %1092 = vmatpush2.bf16.msra.mxu0 0
      %1093 = vmatprep.mubr.bf16.mxu0 0
      %1094 = vmatmul.mubr.bf16.gmra.mxu0 %v1008
      %v1095 = vpop.f32.mrf.mxu0
      %v1096 = vadd.f32 %v932, %v1095
      %v1097 = vpop.f32.mrf.mxu0
      %v1098 = vpop.f32.mrf.mxu0
      %v1099 = vpop.f32.mrf.mxu0
      %1100 = vdwg.mxu0
      %v1101 = vmax.f32 %v1055, 0.0
      %v1102 = vmax.f32 %v1057, 0.0
      %v1103 = vmax.f32 %v1096, 0.0
      %v1104 = vld [vmem:[%s5] sm:$0x1]
      %v1105 = vpack.c.bf16 %v1101, %v1101
      %v1106 = vpack.c.bf16 %v1102, %v1102
      %v1107 = vpack.c.bf16 %v1103, %v1103
      %v1108 = vld [vmem:[%s6] sm:$0x3]
      %1110 = vset.pattern.permute.xlu0 0
      %1111 = vperm.xlu0 %1110, %v1108
      %v1112 = vpop.permute.xlu0 %1111
      %vm1114 = vcmask 64512
      %v1116 = vsel %vm1114, %v1104, 0
      %v1119 = vsel %vm1010, %v1105, 0
      %v1122 = vsel %vm1010, %v1106, 0
      %v1125 = vsel %vm1010, %v1107, 0
      %1127 = vmatprep.subr.bf16.mxu0 0
      %1128 = vmatpush1.bf16.msra.mxu0 0
      %1129 = vmatprep.subr.bf16.mxu0 0
      %1130 = vmatpush1.bf16.msra.mxu0 0
      %1131 = vmatprep.subr.bf16.mxu0 0
      %1132 = vmatpush1.bf16.msra.mxu0 0
      %1133 = vmatprep.subr.bf16.mxu0 0
      %1134 = vmatpush1.bf16.msra.mxu0 0
      %1135 = vmatprep.subr.bf16.mxu0 0
      %1136 = vmatpush1.bf16.msra.mxu0 0
      %1137 = vmatprep.subr.bf16.mxu0 0
      %1138 = vmatpush1.bf16.msra.mxu0 0
      %1139 = vmatprep.subr.bf16.mxu0 0
      %1140 = vmatpush1.bf16.msra.mxu0 0
      %1141 = vmatprep.subr.bf16.mxu0 %v1122
      %1142 = vmatpush1.bf16.msra.mxu0 %v1119
      %1143 = vmatprep.subr.bf16.mxu0 0
      %1144 = vmatpush2.bf16.msra.mxu0 0
      %1145 = vmatprep.subr.bf16.mxu0 0
      %1146 = vmatpush2.bf16.msra.mxu0 0
      %1147 = vmatprep.subr.bf16.mxu0 0
      %1148 = vmatpush2.bf16.msra.mxu0 0
      %1149 = vmatprep.subr.bf16.mxu0 0
      %1150 = vmatpush2.bf16.msra.mxu0 0
      %1151 = vmatprep.subr.bf16.mxu0 0
      %1152 = vmatpush2.bf16.msra.mxu0 0
      %1153 = vmatprep.subr.bf16.mxu0 0
      %1154 = vmatpush2.bf16.msra.mxu0 0
      %1155 = vmatprep.subr.bf16.mxu0 0
      %1156 = vmatpush2.bf16.msra.mxu0 0
      %1157 = vmatprep.subr.bf16.mxu0 0
      %1158 = vmatpush2.bf16.msra.mxu0 0
      %1159 = vmatprep.mubr.bf16.mxu0 0
      %1160 = vmatmul.mubr.bf16.gmra.mxu0 %v1116
      %v1161 = vpop.f32.mrf.mxu0
      %v1162 = vadd.f32 %v1112, %v1161
      %v1163 = vpop.f32.mrf.mxu0
      %v1164 = vadd.f32 %v1112, %v1163
      %v1165 = vpop.f32.mrf.mxu0
      %v1166 = vpop.f32.mrf.mxu0
      %1167 = vdwg.mxu0
      %1168 = vmatprep.subr.bf16.mxu0 0
      %1169 = vmatpush1.bf16.msra.mxu0 0
      %1170 = vmatprep.subr.bf16.mxu0 0
      %1171 = vmatpush1.bf16.msra.mxu0 0
      %1172 = vmatprep.subr.bf16.mxu0 0
      %1173 = vmatpush1.bf16.msra.mxu0 0
      %1174 = vmatprep.subr.bf16.mxu0 0
      %1175 = vmatpush1.bf16.msra.mxu0 0
      %1176 = vmatprep.subr.bf16.mxu0 0
      %1177 = vmatpush1.bf16.msra.mxu0 0
      %1178 = vmatprep.subr.bf16.mxu0 0
      %1179 = vmatpush1.bf16.msra.mxu0 0
      %1180 = vmatprep.subr.bf16.mxu0 0
      %1181 = vmatpush1.bf16.msra.mxu0 0
      %1182 = vmatprep.subr.bf16.mxu0 0
      %1183 = vmatpush1.bf16.msra.mxu0 %v1125
      %1184 = vmatprep.subr.bf16.mxu0 0
      %1185 = vmatpush2.bf16.msra.mxu0 0
      %1186 = vmatprep.subr.bf16.mxu0 0
      %1187 = vmatpush2.bf16.msra.mxu0 0
      %1188 = vmatprep.subr.bf16.mxu0 0
      %1189 = vmatpush2.bf16.msra.mxu0 0
      %1190 = vmatprep.subr.bf16.mxu0 0
      %1191 = vmatpush2.bf16.msra.mxu0 0
      %1192 = vmatprep.subr.bf16.mxu0 0
      %1193 = vmatpush2.bf16.msra.mxu0 0
      %1194 = vmatprep.subr.bf16.mxu0 0
      %1195 = vmatpush2.bf16.msra.mxu0 0
      %1196 = vmatprep.subr.bf16.mxu0 0
      %1197 = vmatpush2.bf16.msra.mxu0 0
      %1198 = vmatprep.subr.bf16.mxu0 0
      %1199 = vmatpush2.bf16.msra.mxu0 0
      %1200 = vmatprep.mubr.bf16.mxu0 0
      %1201 = vmatmul.mubr.bf16.gmra.mxu0 %v1116
      %v1202 = vpop.f32.mrf.mxu0
      %v1203 = vadd.f32 %v1112, %v1202
      %v1204 = vpop.f32.mrf.mxu0
      %v1205 = vpop.f32.mrf.mxu0
      %v1206 = vpop.f32.mrf.mxu0
      %1207 = vdwg.mxu0
      %v1211 = vcombine.low %v1162, %v1164
      %v1213 = vunpack.c.l.s4 1983009808
      %v1214 = vunpack.c.0.s8 %v1213
      %v1215 = vlaneseq
      %v1216 = vshrl.u32 %v1215, 7
      %v1217 = vsub.s32 %v1214, %v1216
      %v1218 = vrot.slane %v1211, %v1217
      %v1220 = vunpack.c.l.s4 1983009808
      %v1221 = vunpack.c.0.s8 %v1220
      %v1222 = vlaneseq
      %v1223 = vshrl.u32 %v1222, 7
      %v1224 = vsub.s32 %v1221, %v1223
      %v1225 = vrot.slane %v1203, %v1224
      %v1226 = vcombine.low %v1218, %v1225
      %1228 = vst [vmem:[%s305] sm:$0x3f] %v1226
      %p1229 = scmp.lt.s32.totalorder %s19, 1
      %s1230 = scalar_select %p1229, %s19, 1
      %s1231 = smul.addr %s1230, 3
      %s1232 = smul.addr %s1231, 2
      %s1233 = scalar_lea.vmem %s8, %s1232
      // Predicated region
      $region53: #{segmodel_forward.1} parent=51 // pred_check
        %p1234 = pneg %p210
      $region54: #{segmodel_forward.1} parent=51 // pred_check_branch
        %1236 = sbr.rel (%p1234) target = $region56
      $region55: #{segmodel_forward.1} parent=51 // pred_region
        _
      $region56: #{segmodel_forward.1} parent=51 // pred_fallthru
        _
    $region52: #{segmodel_forward.1} parent=5 // pred_fallthru
      _
    %p1237 = scmp.le.s32.totalorder 2, %s14
    // Predicated region
    $region57: #{segmodel_forward.1} parent=5 // pred_check
      %p1238 = pneg %p1237
    $region58: #{segmodel_forward.1} parent=5 // pred_check_branch
      %1240 = sbr.rel (%p1238) target = $region60
    $region59: #{segmodel_forward.1} parent=5 // pred_region
      %s1241 = ssub.s32 %s14, 2
      // Predicated region
      $region61: #{segmodel_forward.1} parent=59 // pred_check
        %p1242 = pneg %p216
      $region62: #{segmodel_forward.1} parent=59 // pred_check_branch
        %1244 = sbr.rel (%p1242) target = $region64
      $region63: #{segmodel_forward.1} parent=59 // pred_region
        %p1245 = scmp.lt.s32.totalorder %s20, 1
        %s1246 = scalar_select %p1245, %s20, 1
        %s1247 = smul.addr %s1246, 3
        %s1248 = smul.addr %s1247, 2
        %s1249 = scalar_lea.vmem %s8, %s1248
      $region64: #{segmodel_forward.1} parent=59 // pred_fallthru
        _
    $region60: #{segmodel_forward.1} parent=5 // pred_fallthru
      _
  $region6: #{segmodel_forward.1} parent=0 // loop_footer
    %s18 = sadd.s32 1, %s14
  $region7: #{segmodel_forward.1} parent=0 // loop_footer_branch
    %13 = sbr.rel target = $region3
  $region8: #{segmodel_forward.1} parent=0 // loop_exit
    _

</llo_original>
